<compile_context>
chip_gen: v6e
topology: v6e:2x2x1
jax: 0.10.0
libtpu: 0.0.40
codegen_flags: <defaults>
</compile_context>

<pallas_src>
import functools

import numpy as np
import jax
import jax.numpy as jnp
from jax.experimental import pallas as pl
from jax.experimental.pallas import tpu as pltpu


# ----------------------------------------------------------------------------
# Pallas kernel: tiled GEMM + (folded-BN) shift + optional ReLU
# ----------------------------------------------------------------------------
def _gemm_kernel(x_ref, w_ref, shift_ref, o_ref, acc_ref, *, relu):
    """acc += x @ w over the K grid axis; on last K step: out = act(acc + shift)."""
    @pl.when(pl.program_id(2) == 0)
    def _():
        acc_ref[...] = jnp.zeros_like(acc_ref)

    acc_ref[...] += jnp.dot(
        x_ref[...], w_ref[...], preferred_element_type=jnp.float32
    )

    @pl.when(pl.program_id(2) == pl.num_programs(2) - 1)
    def _():
        out = acc_ref[...] + shift_ref[...]          # (tm,tn) + (1,tn) broadcast
        if relu:
            out = jnp.maximum(out, 0.0)
        o_ref[...] = out.astype(o_ref.dtype)


def _round_up(v, m):
    return (v + m - 1) // m * m


def tiled_gemm(x, w, shift, relu, tm=512, tn=256, tk=512):
    """out = act(x @ w + shift); x:(M,K), w:(K,N), shift:(1,N) -> (M,N) f32.

    Pads M/N/K up to tile multiples (lane-dense, MXU-aligned), runs a tiled,
    double-buffered Pallas GEMM with an f32 VMEM accumulator, trims padding.
    """
    M, K = x.shape
    K2, N = w.shape
    assert K == K2

    # Clamp tiles to the (aligned) problem size so tiny test shapes still work.
    tm = min(tm, _round_up(M, 8))
    tn = min(tn, _round_up(N, 128))
    tk = min(tk, _round_up(K, 128))
    Mp, Np, Kp = _round_up(M, tm), _round_up(N, tn), _round_up(K, tk)

    xp = jnp.pad(x, ((0, Mp - M), (0, Kp - K)))
    wp = jnp.pad(w, ((0, Kp - K), (0, Np - N)))
    sp = jnp.pad(shift.astype(jnp.float32), ((0, 0), (0, Np - N)))

    grid = (Mp // tm, Np // tn, Kp // tk)
    kernel = functools.partial(_gemm_kernel, relu=relu)

    bytes_accessed = (xp.size * xp.dtype.itemsize
                      + wp.size * wp.dtype.itemsize
                      + sp.size * 4
                      + Mp * Np * 4)

    out = pl.pallas_call(
        kernel,
        out_shape=jax.ShapeDtypeStruct((Mp, Np), jnp.float32),
        grid_spec=pltpu.PrefetchScalarGridSpec(
            num_scalar_prefetch=0,
            grid=grid,
            in_specs=[
                pl.BlockSpec((tm, tk), lambda i, j, k: (i, k)),
                pl.BlockSpec((tk, tn), lambda i, j, k: (k, j)),
                pl.BlockSpec((1, tn), lambda i, j, k: (0, j)),
            ],
            out_specs=pl.BlockSpec((tm, tn), lambda i, j, k: (i, j)),
            scratch_shapes=[pltpu.VMEM((tm, tn), jnp.float32)],
        ),
        compiler_params=pltpu.CompilerParams(
            dimension_semantics=("parallel", "parallel", "arbitrary"),
            vmem_limit_bytes=48 * 1024 * 1024,   # headroom vs v7x 64 MiB VMEM
        ),
        cost_estimate=pl.CostEstimate(
            flops=2 * Mp * Np * Kp,
            transcendentals=0,
            bytes_accessed=bytes_accessed,
        ),
    )(xp, wp, sp)
    return out[:M, :N]


# ----------------------------------------------------------------------------
# Plain-JAX glue: NHWC im2col, BN folding, separable bilinear matrices
# ----------------------------------------------------------------------------
def im2col_nhwc(x, kh, kw, stride, pad):
    """x: (N,H,W,C) -> patches (N*Ho*Wo, kh*kw*C); no big transposes needed."""
    xp = jnp.pad(x, ((0, 0), (pad, pad), (pad, pad), (0, 0)))
    N, Hp, Wp, C = xp.shape
    Ho = (Hp - kh) // stride + 1
    Wo = (Wp - kw) // stride + 1
    cols = []
    for i in range(kh):
        for j in range(kw):
            cols.append(xp[:, i:i + stride * Ho:stride, j:j + stride * Wo:stride, :])
    patches = jnp.concatenate(cols, axis=-1)           # (N, Ho, Wo, kh*kw*C)
    return patches.reshape(N * Ho * Wo, kh * kw * C), Ho, Wo


def conv_bn_relu_nhwc(x, w, gamma, beta, mean, var, stride, pad, relu, eps=1e-5):
    """PyTorch Conv2d(bias=False)+BatchNorm2d(eval)+ReLU; x NHWC, w (Cout,Cin,kh,kw)."""
    N = x.shape[0]
    Cout, Cin, kh, kw = w.shape
    patches, Ho, Wo = im2col_nhwc(x, kh, kw, stride, pad)
    # K ordering (i, j, ci) matches the im2col concat order above.
    wt = jnp.transpose(w, (2, 3, 1, 0)).reshape(kh * kw * Cin, Cout)
    scale = gamma / jnp.sqrt(var + eps)
    wt = wt * scale[None, :]                           # fold BN scale into weights
    shift = (beta - mean * scale)[None, :]             # kernel only adds this
    out = tiled_gemm(patches.astype(jnp.bfloat16), wt.astype(jnp.bfloat16),
                     shift, relu=relu)
    return out.reshape(N, Ho, Wo, Cout)


def conv1x1_bias_nhwc(x, w, b):
    """PyTorch 1x1 Conv2d with bias (projection head); x NHWC."""
    N, H, W, Cin = x.shape
    Cout = w.shape[0]
    wt = w.reshape(Cout, Cin).T                        # (Cin, Cout)
    flat = x.reshape(N * H * W, Cin)
    out = tiled_gemm(flat.astype(jnp.bfloat16), wt.astype(jnp.bfloat16),
                     b[None, :], relu=False)
    return out.reshape(N, H, W, Cout)


def _interp_matrix(in_size, out_size):
    """Row-stochastic matrix reproducing F.interpolate bilinear, align_corners=False."""
    dst = np.arange(out_size, dtype=np.float64)
    src = (dst + 0.5) * (in_size / out_size) - 0.5
    src = np.clip(src, 0.0, None)
    i0 = np.minimum(np.floor(src).astype(np.int64), in_size - 1)
    i1 = np.minimum(i0 + 1, in_size - 1)
    frac = src - i0
    W = np.zeros((out_size, in_size), dtype=np.float64)
    W[np.arange(out_size), i0] += 1.0 - frac
    W[np.arange(out_size), i1] += frac
    return W


def bilinear_resize_nchw(z, out_h, out_w):
    """z: (N,C,H,W) -> (N,C,out_h,out_w); separable bilinear (two small GEMMs)."""
    N, C, H, W = z.shape
    ww_t = jnp.asarray(_interp_matrix(W, out_w).T, jnp.float32)   # (W, out_w)
    wh_t = jnp.asarray(_interp_matrix(H, out_h).T, jnp.float32)   # (H, out_h)
    zero_w = jnp.zeros((1, out_w), jnp.float32)
    zero_h = jnp.zeros((1, out_h), jnp.float32)
    # resize along W:  (N*C*H, W) @ (W, out_w)     [f32: keep row-stochastic exact]
    t = tiled_gemm(z.reshape(N * C * H, W), ww_t, zero_w, relu=False)
    t = t.reshape(N, C, H, out_w).transpose(0, 1, 3, 2)           # (N,C,out_w,H)
    # resize along H:  (N*C*out_w, H) @ (H, out_h)
    t = tiled_gemm(t.reshape(N * C * out_w, H), wh_t, zero_h, relu=False)
    return t.reshape(N, C, out_w, out_h).transpose(0, 1, 3, 2)    # (N,C,out_h,out_w)


# ----------------------------------------------------------------------------
# Model: parameters + forward
# ----------------------------------------------------------------------------
def init_params(key, in_ch, stem_ch, embed_dim):
    ks = jax.random.split(key, 4)

    def conv_w(k, cout, cin, kh, kw):
        return 0.1 * jax.random.normal(k, (cout, cin, kh, kw), jnp.float32)

    def bn(c):
        return dict(gamma=jnp.ones((c,), jnp.float32),
                    beta=jnp.zeros((c,), jnp.float32),
                    mean=jnp.zeros((c,), jnp.float32),
                    var=jnp.ones((c,), jnp.float32))

    return {
        "conv1": conv_w(ks[0], stem_ch, in_ch, 3, 3), "bn1": bn(stem_ch),
        "conv2": conv_w(ks[1], stem_ch, stem_ch, 3, 3), "bn2": bn(stem_ch),
        "head_w": conv_w(ks[2], embed_dim, stem_ch, 1, 1),
        "head_b": 0.01 * jax.random.normal(ks[3], (embed_dim,), jnp.float32),
    }


def moves_forward(params, x, embed_size):
    """Mirrors MOVES_Model.forward: z = backbone(x); interpolate; {'e': z}."""
    # Backbone stand-in (HRNet stem style): two stride-2 conv-BN-ReLU + 1x1 head.
    # Internally NHWC; one transpose in, one transpose out (NCHW contract).
    zh = jnp.transpose(x, (0, 2, 3, 1))
    zh = conv_bn_relu_nhwc(zh, params["conv1"], **params["bn1"],
                           stride=2, pad=1, relu=True)
    zh = conv_bn_relu_nhwc(zh, params["conv2"], **params["bn2"],
                           stride=2, pad=1, relu=True)
    zh = conv1x1_bias_nhwc(zh, params["head_w"], params["head_b"])
    z = jnp.transpose(zh, (0, 3, 1, 2))                # -> NCHW
    # F.interpolate(z, size=embed_size, mode='bilinear')  (align_corners=False)
    z = bilinear_resize_nchw(z, embed_size[0], embed_size[1])
    return {"e": z}


# ----------------------------------------------------------------------------
if __name__ == "__main__":
    key = jax.random.PRNGKey(0)
    k_x, k_p = jax.random.split(key)

    # Small shapes consistent with the module: embed_size is both the output
    # spatial size and (via embed_size[0]) the embedding channel count.
    embed_size = (16, 16)
    embed_dim = embed_size[0]
    stem_ch = 32

    x = jax.random.normal(k_x, (2, 3, 16, 16), jnp.float32)       # NCHW images
    params = init_params(k_p, in_ch=3, stem_ch=stem_ch, embed_dim=embed_dim)

    fwd = jax.jit(functools.partial(moves_forward, embed_size=embed_size))
    out = fwd(params, x)
    e = jax.block_until_ready(out["e"])

    assert e.shape == (2, embed_dim, embed_size[0], embed_size[1]), e.shape
    assert e.dtype == jnp.float32
    assert bool(jnp.all(jnp.isfinite(e)))
    print("KERNEL_OK")
</pallas_src>

<mosaic_0001>
module attributes {stable_mosaic.version = 11 : i64} {
  func.func @_gemm_kernel(%arg0: i32, %arg1: i32, %arg2: i32, %arg3: memref<128x128xbf16, #tpu.memory_space<vmem>>, %arg4: memref<128x128xbf16, #tpu.memory_space<vmem>>, %arg5: memref<1x128xf32, #tpu.memory_space<vmem>>, %arg6: memref<128x128xf32, #tpu.memory_space<vmem>>, %arg7: memref<128x128xf32, #tpu.memory_space<vmem>>) attributes {dimension_semantics = [#tpu.dimension_semantics<parallel>, #tpu.dimension_semantics<parallel>, #tpu.dimension_semantics<arbitrary>], iteration_bounds = array<i64: 1, 1, 1>, scalar_prefetch = 0 : i64, scratch_operands = 1 : i64, tpu.core_type = #tpu.core_type<tc>, window_params = [{transform_indices = @transform_0, window_bounds = array<i64: 128, 128>}, {transform_indices = @transform_1, window_bounds = array<i64: 128, 128>}, {transform_indices = @transform_2, window_bounds = array<i64: 1, 128>}, {transform_indices = @transform_3, window_bounds = array<i64: 128, 128>}]} {
    %c0_i32 = arith.constant 0 : i32
    %0 = arith.cmpi eq, %arg2, %c0_i32 : i32
    %1 = arith.extui %0 : i1 to i32
    %c0_i32_0 = arith.constant 0 : i32
    %2 = arith.cmpi ne, %1, %c0_i32_0 : i32
    scf.if %2 {
      %cst_10 = arith.constant 0.000000e+00 : f32
      %12 = vector.broadcast %cst_10 : f32 to vector<128x128xf32>
      %c0_11 = arith.constant 0 : index
      %c0_12 = arith.constant 0 : index
      %13 = vector.load %arg7[%c0_11, %c0_12] : memref<128x128xf32, #tpu.memory_space<vmem>>, vector<128x128xf32>
      tpu.vector_store %arg7[%c0_11, %c0_12], %12 {strides = array<i32>} : memref<128x128xf32, #tpu.memory_space<vmem>>, vector<128x128xf32>,
    } else {
    }
    %c0 = arith.constant 0 : index
    %c0_1 = arith.constant 0 : index
    %3 = vector.load %arg7[%c0, %c0_1] : memref<128x128xf32, #tpu.memory_space<vmem>>, vector<128x128xf32>
    %c0_2 = arith.constant 0 : index
    %c0_3 = arith.constant 0 : index
    %4 = vector.load %arg3[%c0_2, %c0_3] : memref<128x128xbf16, #tpu.memory_space<vmem>>, vector<128x128xbf16>
    %c0_4 = arith.constant 0 : index
    %c0_5 = arith.constant 0 : index
    %5 = vector.load %arg4[%c0_4, %c0_5] : memref<128x128xbf16, #tpu.memory_space<vmem>>, vector<128x128xbf16>
    %cst = arith.constant dense<0.000000e+00> : vector<128x128xf32>
    %6 = tpu.matmul %4, %5, %cst {dimension_numbers = #tpu.dot_dimension_numbers<[1], [0], [0], [1], [0, 0, 1, 1], [], []>} : vector<128x128xbf16>, vector<128x128xbf16>, vector<128x128xf32> -> vector<128x128xf32>
    %7 = arith.addf %3, %6 : vector<128x128xf32>
    %c0_6 = arith.constant 0 : index
    %c0_7 = arith.constant 0 : index
    %8 = vector.load %arg7[%c0_6, %c0_7] : memref<128x128xf32, #tpu.memory_space<vmem>>, vector<128x128xf32>
    tpu.vector_store %arg7[%c0_6, %c0_7], %7 {strides = array<i32>} : memref<128x128xf32, #tpu.memory_space<vmem>>, vector<128x128xf32>,
    %c0_i32_8 = arith.constant 0 : i32
    %9 = arith.cmpi eq, %arg2, %c0_i32_8 : i32
    %10 = arith.extui %9 : i1 to i32
    %c0_i32_9 = arith.constant 0 : i32
    %11 = arith.cmpi ne, %10, %c0_i32_9 : i32
    scf.if %11 {
      %c0_10 = arith.constant 0 : index
      %c0_11 = arith.constant 0 : index
      %12 = vector.load %arg7[%c0_10, %c0_11] : memref<128x128xf32, #tpu.memory_space<vmem>>, vector<128x128xf32>
      %c0_12 = arith.constant 0 : index
      %c0_13 = arith.constant 0 : index
      %13 = vector.load %arg5[%c0_12, %c0_13] : memref<1x128xf32, #tpu.memory_space<vmem>>, vector<1x128xf32>
      %14 = vector.broadcast %13 : vector<1x128xf32> to vector<128x128xf32>
      %15 = arith.addf %12, %14 : vector<128x128xf32>
      %cst_14 = arith.constant 0.000000e+00 : f32
      %16 = vector.broadcast %cst_14 : f32 to vector<128x128xf32>
      %17 = arith.maximumf %15, %16 : vector<128x128xf32>
      %c0_15 = arith.constant 0 : index
      %c0_16 = arith.constant 0 : index
      %18 = vector.load %arg6[%c0_15, %c0_16] : memref<128x128xf32, #tpu.memory_space<vmem>>, vector<128x128xf32>
      tpu.vector_store %arg6[%c0_15, %c0_16], %17 {strides = array<i32>} : memref<128x128xf32, #tpu.memory_space<vmem>>, vector<128x128xf32>,
    } else {
    }
    return
  }
  func.func @transform_0(%arg0: i32, %arg1: i32, %arg2: i32) -> (i32, i32) {
    %c0_i32 = arith.constant 0 : i32
    return %arg0, %arg2 : i32, i32
  }
  func.func @transform_1(%arg0: i32, %arg1: i32, %arg2: i32) -> (i32, i32) {
    %c0_i32 = arith.constant 0 : i32
    return %arg2, %arg1 : i32, i32
  }
  func.func @transform_2(%arg0: i32, %arg1: i32, %arg2: i32) -> (i32, i32) {
    %c0_i32 = arith.constant 0 : i32
    %c0_i32_0 = arith.constant 0 : i32
    return %c0_i32, %arg1 : i32, i32
  }
  func.func @transform_3(%arg0: i32, %arg1: i32, %arg2: i32) -> (i32, i32) {
    %c0_i32 = arith.constant 0 : i32
    return %arg0, %arg1 : i32, i32
  }
}

module attributes {stable_mosaic.version = 11 : i64} {
  func.func @_gemm_kernel(%arg0: i32, %arg1: i32, %arg2: i32, %arg3: memref<32x384xbf16, #tpu.memory_space<vmem>>, %arg4: memref<384x128xbf16, #tpu.memory_space<vmem>>, %arg5: memref<1x128xf32, #tpu.memory_space<vmem>>, %arg6: memref<32x128xf32, #tpu.memory_space<vmem>>, %arg7: memref<32x128xf32, #tpu.memory_space<vmem>>) attributes {dimension_semantics = [#tpu.dimension_semantics<parallel>, #tpu.dimension_semantics<parallel>, #tpu.dimension_semantics<arbitrary>], iteration_bounds = array<i64: 1, 1, 1>, scalar_prefetch = 0 : i64, scratch_operands = 1 : i64, tpu.core_type = #tpu.core_type<tc>, window_params = [{transform_indices = @transform_0, window_bounds = array<i64: 32, 384>}, {transform_indices = @transform_1, window_bounds = array<i64: 384, 128>}, {transform_indices = @transform_2, window_bounds = array<i64: 1, 128>}, {transform_indices = @transform_3, window_bounds = array<i64: 32, 128>}]} {
    %c0_i32 = arith.constant 0 : i32
    %0 = arith.cmpi eq, %arg2, %c0_i32 : i32
    %1 = arith.extui %0 : i1 to i32
    %c0_i32_0 = arith.constant 0 : i32
    %2 = arith.cmpi ne, %1, %c0_i32_0 : i32
    scf.if %2 {
      %cst_10 = arith.constant 0.000000e+00 : f32
      %12 = vector.broadcast %cst_10 : f32 to vector<32x128xf32>
      %c0_11 = arith.constant 0 : index
      %c0_12 = arith.constant 0 : index
      %13 = vector.load %arg7[%c0_11, %c0_12] : memref<32x128xf32, #tpu.memory_space<vmem>>, vector<32x128xf32>
      tpu.vector_store %arg7[%c0_11, %c0_12], %12 {strides = array<i32>} : memref<32x128xf32, #tpu.memory_space<vmem>>, vector<32x128xf32>,
    } else {
    }
    %c0 = arith.constant 0 : index
    %c0_1 = arith.constant 0 : index
    %3 = vector.load %arg7[%c0, %c0_1] : memref<32x128xf32, #tpu.memory_space<vmem>>, vector<32x128xf32>
    %c0_2 = arith.constant 0 : index
    %c0_3 = arith.constant 0 : index
    %4 = vector.load %arg3[%c0_2, %c0_3] : memref<32x384xbf16, #tpu.memory_space<vmem>>, vector<32x384xbf16>
    %c0_4 = arith.constant 0 : index
    %c0_5 = arith.constant 0 : index
    %5 = vector.load %arg4[%c0_4, %c0_5] : memref<384x128xbf16, #tpu.memory_space<vmem>>, vector<384x128xbf16>
    %cst = arith.constant dense<0.000000e+00> : vector<32x128xf32>
    %6 = tpu.matmul %4, %5, %cst {dimension_numbers = #tpu.dot_dimension_numbers<[1], [0], [0], [1], [0, 0, 1, 1], [], []>} : vector<32x384xbf16>, vector<384x128xbf16>, vector<32x128xf32> -> vector<32x128xf32>
    %7 = arith.addf %3, %6 : vector<32x128xf32>
    %c0_6 = arith.constant 0 : index
    %c0_7 = arith.constant 0 : index
    %8 = vector.load %arg7[%c0_6, %c0_7] : memref<32x128xf32, #tpu.memory_space<vmem>>, vector<32x128xf32>
    tpu.vector_store %arg7[%c0_6, %c0_7], %7 {strides = array<i32>} : memref<32x128xf32, #tpu.memory_space<vmem>>, vector<32x128xf32>,
    %c0_i32_8 = arith.constant 0 : i32
    %9 = arith.cmpi eq, %arg2, %c0_i32_8 : i32
    %10 = arith.extui %9 : i1 to i32
    %c0_i32_9 = arith.constant 0 : i32
    %11 = arith.cmpi ne, %10, %c0_i32_9 : i32
    scf.if %11 {
      %c0_10 = arith.constant 0 : index
      %c0_11 = arith.constant 0 : index
      %12 = vector.load %arg7[%c0_10, %c0_11] : memref<32x128xf32, #tpu.memory_space<vmem>>, vector<32x128xf32>
      %c0_12 = arith.constant 0 : index
      %c0_13 = arith.constant 0 : index
      %13 = vector.load %arg5[%c0_12, %c0_13] : memref<1x128xf32, #tpu.memory_space<vmem>>, vector<1x128xf32>
      %14 = vector.broadcast %13 : vector<1x128xf32> to vector<32x128xf32>
      %15 = arith.addf %12, %14 : vector<32x128xf32>
      %cst_14 = arith.constant 0.000000e+00 : f32
      %16 = vector.broadcast %cst_14 : f32 to vector<32x128xf32>
      %17 = arith.maximumf %15, %16 : vector<32x128xf32>
      %c0_15 = arith.constant 0 : index
      %c0_16 = arith.constant 0 : index
      %18 = vector.load %arg6[%c0_15, %c0_16] : memref<32x128xf32, #tpu.memory_space<vmem>>, vector<32x128xf32>
      tpu.vector_store %arg6[%c0_15, %c0_16], %17 {strides = array<i32>} : memref<32x128xf32, #tpu.memory_space<vmem>>, vector<32x128xf32>,
    } else {
    }
    return
  }
  func.func @transform_0(%arg0: i32, %arg1: i32, %arg2: i32) -> (i32, i32) {
    %c0_i32 = arith.constant 0 : i32
    return %arg0, %arg2 : i32, i32
  }
  func.func @transform_1(%arg0: i32, %arg1: i32, %arg2: i32) -> (i32, i32) {
    %c0_i32 = arith.constant 0 : i32
    return %arg2, %arg1 : i32, i32
  }
  func.func @transform_2(%arg0: i32, %arg1: i32, %arg2: i32) -> (i32, i32) {
    %c0_i32 = arith.constant 0 : i32
    %c0_i32_0 = arith.constant 0 : i32
    return %c0_i32, %arg1 : i32, i32
  }
  func.func @transform_3(%arg0: i32, %arg1: i32, %arg2: i32) -> (i32, i32) {
    %c0_i32 = arith.constant 0 : i32
    return %arg0, %arg1 : i32, i32
  }
}

module attributes {stable_mosaic.version = 11 : i64} {
  func.func @_gemm_kernel(%arg0: i32, %arg1: i32, %arg2: i32, %arg3: memref<32x128xbf16, #tpu.memory_space<vmem>>, %arg4: memref<128x128xbf16, #tpu.memory_space<vmem>>, %arg5: memref<1x128xf32, #tpu.memory_space<vmem>>, %arg6: memref<32x128xf32, #tpu.memory_space<vmem>>, %arg7: memref<32x128xf32, #tpu.memory_space<vmem>>) attributes {dimension_semantics = [#tpu.dimension_semantics<parallel>, #tpu.dimension_semantics<parallel>, #tpu.dimension_semantics<arbitrary>], iteration_bounds = array<i64: 1, 1, 1>, scalar_prefetch = 0 : i64, scratch_operands = 1 : i64, tpu.core_type = #tpu.core_type<tc>, window_params = [{transform_indices = @transform_0, window_bounds = array<i64: 32, 128>}, {transform_indices = @transform_1, window_bounds = array<i64: 128, 128>}, {transform_indices = @transform_2, window_bounds = array<i64: 1, 128>}, {transform_indices = @transform_3, window_bounds = array<i64: 32, 128>}]} {
    %c0_i32 = arith.constant 0 : i32
    %0 = arith.cmpi eq, %arg2, %c0_i32 : i32
    %1 = arith.extui %0 : i1 to i32
    %c0_i32_0 = arith.constant 0 : i32
    %2 = arith.cmpi ne, %1, %c0_i32_0 : i32
    scf.if %2 {
      %cst_10 = arith.constant 0.000000e+00 : f32
      %12 = vector.broadcast %cst_10 : f32 to vector<32x128xf32>
      %c0_11 = arith.constant 0 : index
      %c0_12 = arith.constant 0 : index
      %13 = vector.load %arg7[%c0_11, %c0_12] : memref<32x128xf32, #tpu.memory_space<vmem>>, vector<32x128xf32>
      tpu.vector_store %arg7[%c0_11, %c0_12], %12 {strides = array<i32>} : memref<32x128xf32, #tpu.memory_space<vmem>>, vector<32x128xf32>,
    } else {
    }
    %c0 = arith.constant 0 : index
    %c0_1 = arith.constant 0 : index
    %3 = vector.load %arg7[%c0, %c0_1] : memref<32x128xf32, #tpu.memory_space<vmem>>, vector<32x128xf32>
    %c0_2 = arith.constant 0 : index
    %c0_3 = arith.constant 0 : index
    %4 = vector.load %arg3[%c0_2, %c0_3] : memref<32x128xbf16, #tpu.memory_space<vmem>>, vector<32x128xbf16>
    %c0_4 = arith.constant 0 : index
    %c0_5 = arith.constant 0 : index
    %5 = vector.load %arg4[%c0_4, %c0_5] : memref<128x128xbf16, #tpu.memory_space<vmem>>, vector<128x128xbf16>
    %cst = arith.constant dense<0.000000e+00> : vector<32x128xf32>
    %6 = tpu.matmul %4, %5, %cst {dimension_numbers = #tpu.dot_dimension_numbers<[1], [0], [0], [1], [0, 0, 1, 1], [], []>} : vector<32x128xbf16>, vector<128x128xbf16>, vector<32x128xf32> -> vector<32x128xf32>
    %7 = arith.addf %3, %6 : vector<32x128xf32>
    %c0_6 = arith.constant 0 : index
    %c0_7 = arith.constant 0 : index
    %8 = vector.load %arg7[%c0_6, %c0_7] : memref<32x128xf32, #tpu.memory_space<vmem>>, vector<32x128xf32>
    tpu.vector_store %arg7[%c0_6, %c0_7], %7 {strides = array<i32>} : memref<32x128xf32, #tpu.memory_space<vmem>>, vector<32x128xf32>,
    %c0_i32_8 = arith.constant 0 : i32
    %9 = arith.cmpi eq, %arg2, %c0_i32_8 : i32
    %10 = arith.extui %9 : i1 to i32
    %c0_i32_9 = arith.constant 0 : i32
    %11 = arith.cmpi ne, %10, %c0_i32_9 : i32
    scf.if %11 {
      %c0_10 = arith.constant 0 : index
      %c0_11 = arith.constant 0 : index
      %12 = vector.load %arg7[%c0_10, %c0_11] : memref<32x128xf32, #tpu.memory_space<vmem>>, vector<32x128xf32>
      %c0_12 = arith.constant 0 : index
      %c0_13 = arith.constant 0 : index
      %13 = vector.load %arg5[%c0_12, %c0_13] : memref<1x128xf32, #tpu.memory_space<vmem>>, vector<1x128xf32>
      %14 = vector.broadcast %13 : vector<1x128xf32> to vector<32x128xf32>
      %15 = arith.addf %12, %14 : vector<32x128xf32>
      %c0_14 = arith.constant 0 : index
      %c0_15 = arith.constant 0 : index
      %16 = vector.load %arg6[%c0_14, %c0_15] : memref<32x128xf32, #tpu.memory_space<vmem>>, vector<32x128xf32>
      tpu.vector_store %arg6[%c0_14, %c0_15], %15 {strides = array<i32>} : memref<32x128xf32, #tpu.memory_space<vmem>>, vector<32x128xf32>,
    } else {
    }
    return
  }
  func.func @transform_0(%arg0: i32, %arg1: i32, %arg2: i32) -> (i32, i32) {
    %c0_i32 = arith.constant 0 : i32
    return %arg0, %arg2 : i32, i32
  }
  func.func @transform_1(%arg0: i32, %arg1: i32, %arg2: i32) -> (i32, i32) {
    %c0_i32 = arith.constant 0 : i32
    return %arg2, %arg1 : i32, i32
  }
  func.func @transform_2(%arg0: i32, %arg1: i32, %arg2: i32) -> (i32, i32) {
    %c0_i32 = arith.constant 0 : i32
    %c0_i32_0 = arith.constant 0 : i32
    return %c0_i32, %arg1 : i32, i32
  }
  func.func @transform_3(%arg0: i32, %arg1: i32, %arg2: i32) -> (i32, i32) {
    %c0_i32 = arith.constant 0 : i32
    return %arg0, %arg1 : i32, i32
  }
}

module attributes {stable_mosaic.version = 11 : i64} {
  func.func @_gemm_kernel(%arg0: i32, %arg1: i32, %arg2: i32, %arg3: memref<128x128xf32, #tpu.memory_space<vmem>>, %arg4: memref<128x128xf32, #tpu.memory_space<vmem>>, %arg5: memref<1x128xf32, #tpu.memory_space<vmem>>, %arg6: memref<128x128xf32, #tpu.memory_space<vmem>>, %arg7: memref<128x128xf32, #tpu.memory_space<vmem>>) attributes {dimension_semantics = [#tpu.dimension_semantics<parallel>, #tpu.dimension_semantics<parallel>, #tpu.dimension_semantics<arbitrary>], iteration_bounds = array<i64: 1, 1, 1>, scalar_prefetch = 0 : i64, scratch_operands = 1 : i64, tpu.core_type = #tpu.core_type<tc>, window_params = [{transform_indices = @transform_0, window_bounds = array<i64: 128, 128>}, {transform_indices = @transform_1, window_bounds = array<i64: 128, 128>}, {transform_indices = @transform_2, window_bounds = array<i64: 1, 128>}, {transform_indices = @transform_3, window_bounds = array<i64: 128, 128>}]} {
    %c0_i32 = arith.constant 0 : i32
    %0 = arith.cmpi eq, %arg2, %c0_i32 : i32
    %1 = arith.extui %0 : i1 to i32
    %c0_i32_0 = arith.constant 0 : i32
    %2 = arith.cmpi ne, %1, %c0_i32_0 : i32
    scf.if %2 {
      %cst_10 = arith.constant 0.000000e+00 : f32
      %12 = vector.broadcast %cst_10 : f32 to vector<128x128xf32>
      %c0_11 = arith.constant 0 : index
      %c0_12 = arith.constant 0 : index
      %13 = vector.load %arg7[%c0_11, %c0_12] : memref<128x128xf32, #tpu.memory_space<vmem>>, vector<128x128xf32>
      tpu.vector_store %arg7[%c0_11, %c0_12], %12 {strides = array<i32>} : memref<128x128xf32, #tpu.memory_space<vmem>>, vector<128x128xf32>,
    } else {
    }
    %c0 = arith.constant 0 : index
    %c0_1 = arith.constant 0 : index
    %3 = vector.load %arg7[%c0, %c0_1] : memref<128x128xf32, #tpu.memory_space<vmem>>, vector<128x128xf32>
    %c0_2 = arith.constant 0 : index
    %c0_3 = arith.constant 0 : index
    %4 = vector.load %arg3[%c0_2, %c0_3] : memref<128x128xf32, #tpu.memory_space<vmem>>, vector<128x128xf32>
    %c0_4 = arith.constant 0 : index
    %c0_5 = arith.constant 0 : index
    %5 = vector.load %arg4[%c0_4, %c0_5] : memref<128x128xf32, #tpu.memory_space<vmem>>, vector<128x128xf32>
    %cst = arith.constant dense<0.000000e+00> : vector<128x128xf32>
    %6 = tpu.matmul %4, %5, %cst {dimension_numbers = #tpu.dot_dimension_numbers<[1], [0], [0], [1], [0, 0, 1, 1], [], []>} : vector<128x128xf32>, vector<128x128xf32>, vector<128x128xf32> -> vector<128x128xf32>
    %7 = arith.addf %3, %6 : vector<128x128xf32>
    %c0_6 = arith.constant 0 : index
    %c0_7 = arith.constant 0 : index
    %8 = vector.load %arg7[%c0_6, %c0_7] : memref<128x128xf32, #tpu.memory_space<vmem>>, vector<128x128xf32>
    tpu.vector_store %arg7[%c0_6, %c0_7], %7 {strides = array<i32>} : memref<128x128xf32, #tpu.memory_space<vmem>>, vector<128x128xf32>,
    %c0_i32_8 = arith.constant 0 : i32
    %9 = arith.cmpi eq, %arg2, %c0_i32_8 : i32
    %10 = arith.extui %9 : i1 to i32
    %c0_i32_9 = arith.constant 0 : i32
    %11 = arith.cmpi ne, %10, %c0_i32_9 : i32
    scf.if %11 {
      %c0_10 = arith.constant 0 : index
      %c0_11 = arith.constant 0 : index
      %12 = vector.load %arg7[%c0_10, %c0_11] : memref<128x128xf32, #tpu.memory_space<vmem>>, vector<128x128xf32>
      %c0_12 = arith.constant 0 : index
      %c0_13 = arith.constant 0 : index
      %13 = vector.load %arg5[%c0_12, %c0_13] : memref<1x128xf32, #tpu.memory_space<vmem>>, vector<1x128xf32>
      %14 = vector.broadcast %13 : vector<1x128xf32> to vector<128x128xf32>
      %15 = arith.addf %12, %14 : vector<128x128xf32>
      %c0_14 = arith.constant 0 : index
      %c0_15 = arith.constant 0 : index
      %16 = vector.load %arg6[%c0_14, %c0_15] : memref<128x128xf32, #tpu.memory_space<vmem>>, vector<128x128xf32>
      tpu.vector_store %arg6[%c0_14, %c0_15], %15 {strides = array<i32>} : memref<128x128xf32, #tpu.memory_space<vmem>>, vector<128x128xf32>,
    } else {
    }
    return
  }
  func.func @transform_0(%arg0: i32, %arg1: i32, %arg2: i32) -> (i32, i32) {
    %c0_i32 = arith.constant 0 : i32
    return %arg0, %arg2 : i32, i32
  }
  func.func @transform_1(%arg0: i32, %arg1: i32, %arg2: i32) -> (i32, i32) {
    %c0_i32 = arith.constant 0 : i32
    return %arg2, %arg1 : i32, i32
  }
  func.func @transform_2(%arg0: i32, %arg1: i32, %arg2: i32) -> (i32, i32) {
    %c0_i32 = arith.constant 0 : i32
    %c0_i32_0 = arith.constant 0 : i32
    return %c0_i32, %arg1 : i32, i32
  }
  func.func @transform_3(%arg0: i32, %arg1: i32, %arg2: i32) -> (i32, i32) {
    %c0_i32 = arith.constant 0 : i32
    return %arg0, %arg1 : i32, i32
  }
}

module attributes {stable_mosaic.version = 11 : i64} {
  func.func @_gemm_kernel(%arg0: i32, %arg1: i32, %arg2: i32, %arg3: memref<512x128xf32, #tpu.memory_space<vmem>>, %arg4: memref<128x128xf32, #tpu.memory_space<vmem>>, %arg5: memref<1x128xf32, #tpu.memory_space<vmem>>, %arg6: memref<512x128xf32, #tpu.memory_space<vmem>>, %arg7: memref<512x128xf32, #tpu.memory_space<vmem>>) attributes {dimension_semantics = [#tpu.dimension_semantics<parallel>, #tpu.dimension_semantics<parallel>, #tpu.dimension_semantics<arbitrary>], iteration_bounds = array<i64: 1, 1, 1>, scalar_prefetch = 0 : i64, scratch_operands = 1 : i64, tpu.core_type = #tpu.core_type<tc>, window_params = [{transform_indices = @transform_0, window_bounds = array<i64: 512, 128>}, {transform_indices = @transform_1, window_bounds = array<i64: 128, 128>}, {transform_indices = @transform_2, window_bounds = array<i64: 1, 128>}, {transform_indices = @transform_3, window_bounds = array<i64: 512, 128>}]} {
    %c0_i32 = arith.constant 0 : i32
    %0 = arith.cmpi eq, %arg2, %c0_i32 : i32
    %1 = arith.extui %0 : i1 to i32
    %c0_i32_0 = arith.constant 0 : i32
    %2 = arith.cmpi ne, %1, %c0_i32_0 : i32
    scf.if %2 {
      %cst_10 = arith.constant 0.000000e+00 : f32
      %12 = vector.broadcast %cst_10 : f32 to vector<512x128xf32>
      %c0_11 = arith.constant 0 : index
      %c0_12 = arith.constant 0 : index
      %13 = vector.load %arg7[%c0_11, %c0_12] : memref<512x128xf32, #tpu.memory_space<vmem>>, vector<512x128xf32>
      tpu.vector_store %arg7[%c0_11, %c0_12], %12 {strides = array<i32>} : memref<512x128xf32, #tpu.memory_space<vmem>>, vector<512x128xf32>,
    } else {
    }
    %c0 = arith.constant 0 : index
    %c0_1 = arith.constant 0 : index
    %3 = vector.load %arg7[%c0, %c0_1] : memref<512x128xf32, #tpu.memory_space<vmem>>, vector<512x128xf32>
    %c0_2 = arith.constant 0 : index
    %c0_3 = arith.constant 0 : index
    %4 = vector.load %arg3[%c0_2, %c0_3] : memref<512x128xf32, #tpu.memory_space<vmem>>, vector<512x128xf32>
    %c0_4 = arith.constant 0 : index
    %c0_5 = arith.constant 0 : index
    %5 = vector.load %arg4[%c0_4, %c0_5] : memref<128x128xf32, #tpu.memory_space<vmem>>, vector<128x128xf32>
    %cst = arith.constant dense<0.000000e+00> : vector<512x128xf32>
    %6 = tpu.matmul %4, %5, %cst {dimension_numbers = #tpu.dot_dimension_numbers<[1], [0], [0], [1], [0, 0, 1, 1], [], []>} : vector<512x128xf32>, vector<128x128xf32>, vector<512x128xf32> -> vector<512x128xf32>
    %7 = arith.addf %3, %6 : vector<512x128xf32>
    %c0_6 = arith.constant 0 : index
    %c0_7 = arith.constant 0 : index
    %8 = vector.load %arg7[%c0_6, %c0_7] : memref<512x128xf32, #tpu.memory_space<vmem>>, vector<512x128xf32>
    tpu.vector_store %arg7[%c0_6, %c0_7], %7 {strides = array<i32>} : memref<512x128xf32, #tpu.memory_space<vmem>>, vector<512x128xf32>,
    %c0_i32_8 = arith.constant 0 : i32
    %9 = arith.cmpi eq, %arg2, %c0_i32_8 : i32
    %10 = arith.extui %9 : i1 to i32
    %c0_i32_9 = arith.constant 0 : i32
    %11 = arith.cmpi ne, %10, %c0_i32_9 : i32
    scf.if %11 {
      %c0_10 = arith.constant 0 : index
      %c0_11 = arith.constant 0 : index
      %12 = vector.load %arg7[%c0_10, %c0_11] : memref<512x128xf32, #tpu.memory_space<vmem>>, vector<512x128xf32>
      %c0_12 = arith.constant 0 : index
      %c0_13 = arith.constant 0 : index
      %13 = vector.load %arg5[%c0_12, %c0_13] : memref<1x128xf32, #tpu.memory_space<vmem>>, vector<1x128xf32>
      %14 = vector.broadcast %13 : vector<1x128xf32> to vector<512x128xf32>
      %15 = arith.addf %12, %14 : vector<512x128xf32>
      %c0_14 = arith.constant 0 : index
      %c0_15 = arith.constant 0 : index
      %16 = vector.load %arg6[%c0_14, %c0_15] : memref<512x128xf32, #tpu.memory_space<vmem>>, vector<512x128xf32>
      tpu.vector_store %arg6[%c0_14, %c0_15], %15 {strides = array<i32>} : memref<512x128xf32, #tpu.memory_space<vmem>>, vector<512x128xf32>,
    } else {
    }
    return
  }
  func.func @transform_0(%arg0: i32, %arg1: i32, %arg2: i32) -> (i32, i32) {
    %c0_i32 = arith.constant 0 : i32
    return %arg0, %arg2 : i32, i32
  }
  func.func @transform_1(%arg0: i32, %arg1: i32, %arg2: i32) -> (i32, i32) {
    %c0_i32 = arith.constant 0 : i32
    return %arg2, %arg1 : i32, i32
  }
  func.func @transform_2(%arg0: i32, %arg1: i32, %arg2: i32) -> (i32, i32) {
    %c0_i32 = arith.constant 0 : i32
    %c0_i32_0 = arith.constant 0 : i32
    return %c0_i32, %arg1 : i32, i32
  }
  func.func @transform_3(%arg0: i32, %arg1: i32, %arg2: i32) -> (i32, i32) {
    %c0_i32 = arith.constant 0 : i32
    return %arg0, %arg1 : i32, i32
  }
}

</mosaic_0001>

<llo_original>
// kernel: moves_forward.5
$region0: #{moves_forward.5}
  #allocation0 [shape = 'u32[]', space=smem, size = 0x4, offset = 0x4, fixed_abs, tag = 'smem constant byte address 0x4 - core index']
  #allocation1 [shape = 'u32[144,128]{1,0:T(1,128)}', space=vmem, size = 0x12000, scoped, tag = 'internal scratch']
  #allocation2 [shape = 'f32[128,128]{1,0:T(8,128)}', space=vmem, size = 0x10000, scoped, tag = 'scratch operand']
  %s0 = inlined_call_operand.vmem [shape: bf16[128,128], index: 0, kind: input, shape index: {}]
  %s1 = inlined_call_operand.vmem [shape: bf16[128,128], index: 1, kind: input, shape index: {}]
  %s2 = inlined_call_operand.vmem [shape: f32[1,128], index: 2, kind: input, shape index: {}]
  %s3 = inlined_call_operand.vmem [shape: f32[128,128], index: 3, kind: output, shape index: {}]
  %s4 = sld [smem:[#allocation0]]
  $region30: #{moves_forward.5} parent=0
    _
  %s6 = ssub.s32 1, %s4
  %s7 = scalar_select 0, %s6, %s4
  // Predicated region
  $region2: #{moves_forward.5} parent=0 // pred_check
    _
  $region3: #{moves_forward.5} parent=0 // pred_check_branch
    %9 = sbr.rel (0) target = $region5
  $region4: #{moves_forward.5} parent=0 // pred_region
    _
  $region5: #{moves_forward.5} parent=0 // pred_fallthru
    _
  // Predicated region
  $region6: #{moves_forward.5} parent=0 // pred_check
    _
  $region7: #{moves_forward.5} parent=0 // pred_check_branch
    %11 = sbr.rel (0) target = $region9
  $region8: #{moves_forward.5} parent=0 // pred_region
    _
  $region9: #{moves_forward.5} parent=0 // pred_fallthru
    _
  // Predicated region
  $region10: #{moves_forward.5} parent=0 // pred_check
    _
  $region11: #{moves_forward.5} parent=0 // pred_check_branch
    %13 = sbr.rel (0) target = $region13
  $region12: #{moves_forward.5} parent=0 // pred_region
    _
  $region13: #{moves_forward.5} parent=0 // pred_fallthru
    _
  %p15 = scmp.eq.s32.totalorder 0, 0
  // Predicated region
  $region14: #{moves_forward.5} parent=0 // pred_check
    %p16 = pneg %p15
  $region15: #{moves_forward.5} parent=0 // pred_check_branch
    %18 = sbr.rel (%p16) target = $region17
  $region16: #{moves_forward.5} parent=0 // pred_region
    %19 = vst [vmem:[#allocation2] sm:$0xff] 0.0
    %20 = vst [vmem:[#allocation2 + $0x8] sm:$0xff] 0.0
    %21 = vst [vmem:[#allocation2 + $0x10] sm:$0xff] 0.0
    %22 = vst [vmem:[#allocation2 + $0x18] sm:$0xff] 0.0
    %23 = vst [vmem:[#allocation2 + $0x20] sm:$0xff] 0.0
    %24 = vst [vmem:[#allocation2 + $0x28] sm:$0xff] 0.0
    %25 = vst [vmem:[#allocation2 + $0x30] sm:$0xff] 0.0
    %26 = vst [vmem:[#allocation2 + $0x38] sm:$0xff] 0.0
    %27 = vst [vmem:[#allocation2 + $0x40] sm:$0xff] 0.0
    %28 = vst [vmem:[#allocation2 + $0x48] sm:$0xff] 0.0
    %29 = vst [vmem:[#allocation2 + $0x50] sm:$0xff] 0.0
    %30 = vst [vmem:[#allocation2 + $0x58] sm:$0xff] 0.0
    %31 = vst [vmem:[#allocation2 + $0x60] sm:$0xff] 0.0
    %32 = vst [vmem:[#allocation2 + $0x68] sm:$0xff] 0.0
    %33 = vst [vmem:[#allocation2 + $0x70] sm:$0xff] 0.0
    %34 = vst [vmem:[#allocation2 + $0x78] sm:$0xff] 0.0
  $region17: #{moves_forward.5} parent=0 // pred_fallthru
    _
  %v35 = vld [vmem:[#allocation2] sm:$0xff]
  %v36 = vld [vmem:[#allocation2 + $0x8] sm:$0xff]
  %v37 = vld [vmem:[#allocation2 + $0x10] sm:$0xff]
  %v38 = vld [vmem:[#allocation2 + $0x18] sm:$0xff]
  %v39 = vld [vmem:[#allocation2 + $0x20] sm:$0xff]
  %v40 = vld [vmem:[#allocation2 + $0x28] sm:$0xff]
  %v41 = vld [vmem:[#allocation2 + $0x30] sm:$0xff]
  %v42 = vld [vmem:[#allocation2 + $0x38] sm:$0xff]
  %v43 = vld [vmem:[#allocation2 + $0x40] sm:$0xff]
  %v44 = vld [vmem:[#allocation2 + $0x48] sm:$0xff]
  %v45 = vld [vmem:[#allocation2 + $0x50] sm:$0xff]
  %v46 = vld [vmem:[#allocation2 + $0x58] sm:$0xff]
  %v47 = vld [vmem:[#allocation2 + $0x60] sm:$0xff]
  %v48 = vld [vmem:[#allocation2 + $0x68] sm:$0xff]
  %v49 = vld [vmem:[#allocation2 + $0x70] sm:$0xff]
  %v50 = vld [vmem:[#allocation2 + $0x78] sm:$0xff]
  %v51 = vld [vmem:[%s0] sm:$0xf]
  %v52 = vld [vmem:[%s0 + $0x4] sm:$0xf]
  %v53 = vld [vmem:[%s0 + $0x8] sm:$0xf]
  %v54 = vld [vmem:[%s0 + $0xc] sm:$0xf]
  %v55 = vld [vmem:[%s0 + $0x10] sm:$0xf]
  %v56 = vld [vmem:[%s0 + $0x14] sm:$0xf]
  %v57 = vld [vmem:[%s0 + $0x18] sm:$0xf]
  %v58 = vld [vmem:[%s0 + $0x1c] sm:$0xf]
  %v59 = vld [vmem:[%s0 + $0x20] sm:$0xf]
  %v60 = vld [vmem:[%s0 + $0x24] sm:$0xf]
  %v61 = vld [vmem:[%s0 + $0x28] sm:$0xf]
  %v62 = vld [vmem:[%s0 + $0x2c] sm:$0xf]
  %v63 = vld [vmem:[%s0 + $0x30] sm:$0xf]
  %v64 = vld [vmem:[%s0 + $0x34] sm:$0xf]
  %v65 = vld [vmem:[%s0 + $0x38] sm:$0xf]
  %v66 = vld [vmem:[%s0 + $0x3c] sm:$0xf]
  %v67 = vld [vmem:[%s1] sm:$0xf]
  %v68 = vld [vmem:[%s1 + $0x4] sm:$0xf]
  %v69 = vld [vmem:[%s1 + $0x8] sm:$0xf]
  %v70 = vld [vmem:[%s1 + $0xc] sm:$0xf]
  %v71 = vld [vmem:[%s1 + $0x10] sm:$0xf]
  %v72 = vld [vmem:[%s1 + $0x14] sm:$0xf]
  %v73 = vld [vmem:[%s1 + $0x18] sm:$0xf]
  %v74 = vld [vmem:[%s1 + $0x1c] sm:$0xf]
  %v75 = vld [vmem:[%s1 + $0x20] sm:$0xf]
  %v76 = vld [vmem:[%s1 + $0x24] sm:$0xf]
  %v77 = vld [vmem:[%s1 + $0x28] sm:$0xf]
  %v78 = vld [vmem:[%s1 + $0x2c] sm:$0xf]
  %v79 = vld [vmem:[%s1 + $0x30] sm:$0xf]
  %v80 = vld [vmem:[%s1 + $0x34] sm:$0xf]
  %v81 = vld [vmem:[%s1 + $0x38] sm:$0xf]
  %v82 = vld [vmem:[%s1 + $0x3c] sm:$0xf]
  %v99 = vunpack.c.l.b16 %v51
  %v100 = vunpack.c.l.b16 %v52
  %v101 = vunpack.c.l.b16 %v53
  %v102 = vunpack.c.l.b16 %v54
  %v103 = vunpack.c.l.b16 %v55
  %v104 = vunpack.c.l.b16 %v56
  %v105 = vunpack.c.l.b16 %v57
  %v106 = vunpack.c.l.b16 %v58
  %v107 = vunpack.c.l.b16 %v59
  %v108 = vunpack.c.l.b16 %v60
  %v109 = vunpack.c.l.b16 %v61
  %v110 = vunpack.c.l.b16 %v62
  %v111 = vunpack.c.l.b16 %v63
  %v112 = vunpack.c.l.b16 %v64
  %v113 = vunpack.c.l.b16 %v65
  %v114 = vunpack.c.l.b16 %v66
  %v115 = vpack.c.b16 %v100, %v99
  %v116 = vpack.c.b16 %v102, %v101
  %v117 = vpack.c.b16 %v104, %v103
  %v118 = vpack.c.b16 %v106, %v105
  %v119 = vpack.c.b16 %v108, %v107
  %v120 = vpack.c.b16 %v110, %v109
  %v121 = vpack.c.b16 %v112, %v111
  %v122 = vpack.c.b16 %v114, %v113
  %v147 = vunpack.c.l.b16 %v67
  %v148 = vunpack.c.l.b16 %v68
  %v149 = vunpack.c.l.b16 %v69
  %v150 = vunpack.c.l.b16 %v70
  %v151 = vunpack.c.l.b16 %v71
  %v152 = vunpack.c.l.b16 %v72
  %v153 = vunpack.c.l.b16 %v73
  %v154 = vunpack.c.l.b16 %v74
  %v155 = vunpack.c.l.b16 %v75
  %v156 = vunpack.c.l.b16 %v76
  %v157 = vunpack.c.l.b16 %v77
  %v158 = vunpack.c.l.b16 %v78
  %v159 = vunpack.c.l.b16 %v79
  %v160 = vunpack.c.l.b16 %v80
  %v161 = vunpack.c.l.b16 %v81
  %v162 = vunpack.c.l.b16 %v82
  %v163 = vpack.c.b16 %v148, %v147
  %v164 = vpack.c.b16 %v150, %v149
  %v165 = vpack.c.b16 %v152, %v151
  %v166 = vpack.c.b16 %v154, %v153
  %v167 = vpack.c.b16 %v156, %v155
  %v168 = vpack.c.b16 %v158, %v157
  %v169 = vpack.c.b16 %v160, %v159
  %v170 = vpack.c.b16 %v162, %v161
  %179 = vmatprep.subr.bf16.mxu0 0
  %180 = vmatpush1.bf16.msra.mxu0 %v170
  %181 = vmatprep.subr.bf16.mxu0 0
  %182 = vmatpush1.bf16.msra.mxu0 %v169
  %183 = vmatprep.subr.bf16.mxu0 0
  %184 = vmatpush1.bf16.msra.mxu0 %v168
  %185 = vmatprep.subr.bf16.mxu0 0
  %186 = vmatpush1.bf16.msra.mxu0 %v167
  %187 = vmatprep.subr.bf16.mxu0 0
  %188 = vmatpush1.bf16.msra.mxu0 %v166
  %189 = vmatprep.subr.bf16.mxu0 0
  %190 = vmatpush1.bf16.msra.mxu0 %v165
  %191 = vmatprep.subr.bf16.mxu0 0
  %192 = vmatpush1.bf16.msra.mxu0 %v164
  %193 = vmatprep.subr.bf16.mxu0 0
  %194 = vmatpush1.bf16.msra.mxu0 %v163
  %195 = vmatprep.subr.bf16.mxu0 0
  %196 = vmatpush2.bf16.msra.mxu0 0
  %197 = vmatprep.subr.bf16.mxu0 0
  %198 = vmatpush2.bf16.msra.mxu0 0
  %199 = vmatprep.subr.bf16.mxu0 0
  %200 = vmatpush2.bf16.msra.mxu0 0
  %201 = vmatprep.subr.bf16.mxu0 0
  %202 = vmatpush2.bf16.msra.mxu0 0
  %203 = vmatprep.subr.bf16.mxu0 0
  %204 = vmatpush2.bf16.msra.mxu0 0
  %205 = vmatprep.subr.bf16.mxu0 0
  %206 = vmatpush2.bf16.msra.mxu0 0
  %207 = vmatprep.subr.bf16.mxu0 0
  %208 = vmatpush2.bf16.msra.mxu0 0
  %209 = vmatprep.subr.bf16.mxu0 0
  %210 = vmatpush2.bf16.msra.mxu0 0
  %211 = vmatprep.mubr.bf16.mxu0 0
  %212 = vmatmul.mubr.bf16.gmra.mxu0 %v115
  %v213 = vpop.f32.mrf.mxu0
  %v214 = vadd.f32 0.0, %v213
  %v215 = vpop.f32.mrf.mxu0
  %v216 = vpop.f32.mrf.mxu0
  %v217 = vadd.f32 0.0, %v216
  %v218 = vpop.f32.mrf.mxu0
  %219 = vmatprep.mubr.bf16.mxu0 0
  %220 = vmatmul.mubr.bf16.gmra.mxu0 %v116
  %v221 = vpop.f32.mrf.mxu0
  %v222 = vadd.f32 0.0, %v221
  %v223 = vpop.f32.mrf.mxu0
  %v224 = vpop.f32.mrf.mxu0
  %v225 = vadd.f32 0.0, %v224
  %v226 = vpop.f32.mrf.mxu0
  %227 = vmatprep.mubr.bf16.mxu0 0
  %228 = vmatmul.mubr.bf16.gmra.mxu0 %v117
  %v229 = vpop.f32.mrf.mxu0
  %v230 = vadd.f32 0.0, %v229
  %v231 = vpop.f32.mrf.mxu0
  %v232 = vpop.f32.mrf.mxu0
  %v233 = vadd.f32 0.0, %v232
  %v234 = vpop.f32.mrf.mxu0
  %235 = vmatprep.mubr.bf16.mxu0 0
  %236 = vmatmul.mubr.bf16.gmra.mxu0 %v118
  %v237 = vpop.f32.mrf.mxu0
  %v238 = vadd.f32 0.0, %v237
  %v239 = vpop.f32.mrf.mxu0
  %v240 = vpop.f32.mrf.mxu0
  %v241 = vadd.f32 0.0, %v240
  %v242 = vpop.f32.mrf.mxu0
  %243 = vmatprep.mubr.bf16.mxu0 0
  %244 = vmatmul.mubr.bf16.gmra.mxu0 %v119
  %v245 = vpop.f32.mrf.mxu0
  %v246 = vadd.f32 0.0, %v245
  %v247 = vpop.f32.mrf.mxu0
  %v248 = vpop.f32.mrf.mxu0
  %v249 = vadd.f32 0.0, %v248
  %v250 = vpop.f32.mrf.mxu0
  %251 = vmatprep.mubr.bf16.mxu0 0
  %252 = vmatmul.mubr.bf16.gmra.mxu0 %v120
  %v253 = vpop.f32.mrf.mxu0
  %v254 = vadd.f32 0.0, %v253
  %v255 = vpop.f32.mrf.mxu0
  %v256 = vpop.f32.mrf.mxu0
  %v257 = vadd.f32 0.0, %v256
  %v258 = vpop.f32.mrf.mxu0
  %259 = vmatprep.mubr.bf16.mxu0 0
  %260 = vmatmul.mubr.bf16.gmra.mxu0 %v121
  %v261 = vpop.f32.mrf.mxu0
  %v262 = vadd.f32 0.0, %v261
  %v263 = vpop.f32.mrf.mxu0
  %v264 = vpop.f32.mrf.mxu0
  %v265 = vadd.f32 0.0, %v264
  %v266 = vpop.f32.mrf.mxu0
  %267 = vmatprep.mubr.bf16.mxu0 0
  %268 = vmatmul.mubr.bf16.gmra.mxu0 %v122
  %v269 = vpop.f32.mrf.mxu0
  %v270 = vadd.f32 0.0, %v269
  %v271 = vpop.f32.mrf.mxu0
  %v272 = vpop.f32.mrf.mxu0
  %v273 = vadd.f32 0.0, %v272
  %v274 = vpop.f32.mrf.mxu0
  %275 = vdwg.mxu0
  %v276 = vadd.f32 %v35, %v214
  %v277 = vadd.f32 %v36, %v217
  %v278 = vadd.f32 %v37, %v222
  %v279 = vadd.f32 %v38, %v225
  %v280 = vadd.f32 %v39, %v230
  %v281 = vadd.f32 %v40, %v233
  %v282 = vadd.f32 %v41, %v238
  %v283 = vadd.f32 %v42, %v241
  %v284 = vadd.f32 %v43, %v246
  %v285 = vadd.f32 %v44, %v249
  %v286 = vadd.f32 %v45, %v254
  %v287 = vadd.f32 %v46, %v257
  %v288 = vadd.f32 %v47, %v262
  %v289 = vadd.f32 %v48, %v265
  %v290 = vadd.f32 %v49, %v270
  %v291 = vadd.f32 %v50, %v273
  %292 = vst [vmem:[#allocation2] sm:$0xff] %v276
  %293 = vst [vmem:[#allocation2 + $0x8] sm:$0xff] %v277
  %294 = vst [vmem:[#allocation2 + $0x10] sm:$0xff] %v278
  %295 = vst [vmem:[#allocation2 + $0x18] sm:$0xff] %v279
  %296 = vst [vmem:[#allocation2 + $0x20] sm:$0xff] %v280
  %297 = vst [vmem:[#allocation2 + $0x28] sm:$0xff] %v281
  %298 = vst [vmem:[#allocation2 + $0x30] sm:$0xff] %v282
  %299 = vst [vmem:[#allocation2 + $0x38] sm:$0xff] %v283
  %300 = vst [vmem:[#allocation2 + $0x40] sm:$0xff] %v284
  %301 = vst [vmem:[#allocation2 + $0x48] sm:$0xff] %v285
  %302 = vst [vmem:[#allocation2 + $0x50] sm:$0xff] %v286
  %303 = vst [vmem:[#allocation2 + $0x58] sm:$0xff] %v287
  %304 = vst [vmem:[#allocation2 + $0x60] sm:$0xff] %v288
  %305 = vst [vmem:[#allocation2 + $0x68] sm:$0xff] %v289
  %306 = vst [vmem:[#allocation2 + $0x70] sm:$0xff] %v290
  %307 = vst [vmem:[#allocation2 + $0x78] sm:$0xff] %v291
  // Predicated region
  $region18: #{moves_forward.5} parent=0 // pred_check
    %p308 = pneg %p15
  $region19: #{moves_forward.5} parent=0 // pred_check_branch
    %310 = sbr.rel (%p308) target = $region21
  $region20: #{moves_forward.5} parent=0 // pred_region
    %v311 = vld [vmem:[#allocation2] sm:$0xff]
    %v312 = vld [vmem:[#allocation2 + $0x8] sm:$0xff]
    %v313 = vld [vmem:[#allocation2 + $0x10] sm:$0xff]
    %v314 = vld [vmem:[#allocation2 + $0x18] sm:$0xff]
    %v315 = vld [vmem:[#allocation2 + $0x20] sm:$0xff]
    %v316 = vld [vmem:[#allocation2 + $0x28] sm:$0xff]
    %v317 = vld [vmem:[#allocation2 + $0x30] sm:$0xff]
    %v318 = vld [vmem:[#allocation2 + $0x38] sm:$0xff]
    %v319 = vld [vmem:[#allocation2 + $0x40] sm:$0xff]
    %v320 = vld [vmem:[#allocation2 + $0x48] sm:$0xff]
    %v321 = vld [vmem:[#allocation2 + $0x50] sm:$0xff]
    %v322 = vld [vmem:[#allocation2 + $0x58] sm:$0xff]
    %v323 = vld [vmem:[#allocation2 + $0x60] sm:$0xff]
    %v324 = vld [vmem:[#allocation2 + $0x68] sm:$0xff]
    %v325 = vld [vmem:[#allocation2 + $0x70] sm:$0xff]
    %v326 = vld [vmem:[#allocation2 + $0x78] sm:$0xff]
    %v327 = vld [vmem:[%s2] sm:$0x1]
    %v329 = vlaneseq
    %v330 = vshrl.u32 %v329, 7
    %v331 = vsub.s32 0, %v330
    %v332 = vrot.slane %v327, %v331
    %v334 = vadd.f32 %v311, %v332
    %v335 = vadd.f32 %v312, %v332
    %v336 = vadd.f32 %v313, %v332
    %v337 = vadd.f32 %v314, %v332
    %v338 = vadd.f32 %v315, %v332
    %v339 = vadd.f32 %v316, %v332
    %v340 = vadd.f32 %v317, %v332
    %v341 = vadd.f32 %v318, %v332
    %v342 = vadd.f32 %v319, %v332
    %v343 = vadd.f32 %v320, %v332
    %v344 = vadd.f32 %v321, %v332
    %v345 = vadd.f32 %v322, %v332
    %v346 = vadd.f32 %v323, %v332
    %v347 = vadd.f32 %v324, %v332
    %v348 = vadd.f32 %v325, %v332
    %v349 = vadd.f32 %v326, %v332
    %v350 = vmax.f32 %v334, 0.0
    %v351 = vmax.f32 %v335, 0.0
    %v352 = vmax.f32 %v336, 0.0
    %v353 = vmax.f32 %v337, 0.0
    %v354 = vmax.f32 %v338, 0.0
    %v355 = vmax.f32 %v339, 0.0
    %v356 = vmax.f32 %v340, 0.0
    %v357 = vmax.f32 %v341, 0.0
    %v358 = vmax.f32 %v342, 0.0
    %v359 = vmax.f32 %v343, 0.0
    %v360 = vmax.f32 %v344, 0.0
    %v361 = vmax.f32 %v345, 0.0
    %v362 = vmax.f32 %v346, 0.0
    %v363 = vmax.f32 %v347, 0.0
    %v364 = vmax.f32 %v348, 0.0
    %v365 = vmax.f32 %v349, 0.0
    %366 = vst [vmem:[%s3] sm:$0xff] %v350
    %367 = vst [vmem:[%s3 + $0x8] sm:$0xff] %v351
    %368 = vst [vmem:[%s3 + $0x10] sm:$0xff] %v352
    %369 = vst [vmem:[%s3 + $0x18] sm:$0xff] %v353
    %370 = vst [vmem:[%s3 + $0x20] sm:$0xff] %v354
    %371 = vst [vmem:[%s3 + $0x28] sm:$0xff] %v355
    %372 = vst [vmem:[%s3 + $0x30] sm:$0xff] %v356
    %373 = vst [vmem:[%s3 + $0x38] sm:$0xff] %v357
    %374 = vst [vmem:[%s3 + $0x40] sm:$0xff] %v358
    %375 = vst [vmem:[%s3 + $0x48] sm:$0xff] %v359
    %376 = vst [vmem:[%s3 + $0x50] sm:$0xff] %v360
    %377 = vst [vmem:[%s3 + $0x58] sm:$0xff] %v361
    %378 = vst [vmem:[%s3 + $0x60] sm:$0xff] %v362
    %379 = vst [vmem:[%s3 + $0x68] sm:$0xff] %v363
    %380 = vst [vmem:[%s3 + $0x70] sm:$0xff] %v364
    %381 = vst [vmem:[%s3 + $0x78] sm:$0xff] %v365
  $region21: #{moves_forward.5} parent=0 // pred_fallthru
    _
  // Predicated region
  $region22: #{moves_forward.5} parent=0 // pred_check
    _
  $region23: #{moves_forward.5} parent=0 // pred_check_branch
    %383 = sbr.rel (0) target = $region25
  $region24: #{moves_forward.5} parent=0 // pred_region
    _
  $region25: #{moves_forward.5} parent=0 // pred_fallthru
    _
  // Predicated region
  $region26: #{moves_forward.5} parent=0 // pred_check
    _
  $region27: #{moves_forward.5} parent=0 // pred_check_branch
    %385 = sbr.rel (0) target = $region29
  $region28: #{moves_forward.5} parent=0 // pred_region
    _
  $region29: #{moves_forward.5} parent=0 // pred_fallthru
    _

// kernel: moves_forward.6
$region0: #{moves_forward.6}
  #allocation0 [shape = 'u32[]', space=smem, size = 0x4, offset = 0x4, fixed_abs, tag = 'smem constant byte address 0x4 - core index']
  #allocation1 [shape = 'u32[144,128]{1,0:T(1,128)}', space=vmem, size = 0x12000, scoped, tag = 'internal scratch']
  #allocation2 [shape = 'f32[32,128]{1,0:T(8,128)}', space=vmem, size = 0x4000, scoped, tag = 'scratch operand']
  %s0 = inlined_call_operand.vmem [shape: bf16[32,384], index: 0, kind: input, shape index: {}]
  %s1 = inlined_call_operand.vmem [shape: bf16[384,128], index: 1, kind: input, shape index: {}]
  %s2 = inlined_call_operand.vmem [shape: f32[1,128], index: 2, kind: input, shape index: {}]
  %s3 = inlined_call_operand.vmem [shape: f32[32,128], index: 3, kind: output, shape index: {}]
  %s4 = sld [smem:[#allocation0]]
  $region30: #{moves_forward.6} parent=0
    _
  %s6 = ssub.s32 1, %s4
  %s7 = scalar_select 0, %s6, %s4
  // Predicated region
  $region2: #{moves_forward.6} parent=0 // pred_check
    _
  $region3: #{moves_forward.6} parent=0 // pred_check_branch
    %9 = sbr.rel (0) target = $region5
  $region4: #{moves_forward.6} parent=0 // pred_region
    _
  $region5: #{moves_forward.6} parent=0 // pred_fallthru
    _
  // Predicated region
  $region6: #{moves_forward.6} parent=0 // pred_check
    _
  $region7: #{moves_forward.6} parent=0 // pred_check_branch
    %11 = sbr.rel (0) target = $region9
  $region8: #{moves_forward.6} parent=0 // pred_region
    _
  $region9: #{moves_forward.6} parent=0 // pred_fallthru
    _
  // Predicated region
  $region10: #{moves_forward.6} parent=0 // pred_check
    _
  $region11: #{moves_forward.6} parent=0 // pred_check_branch
    %13 = sbr.rel (0) target = $region13
  $region12: #{moves_forward.6} parent=0 // pred_region
    _
  $region13: #{moves_forward.6} parent=0 // pred_fallthru
    _
  %p15 = scmp.eq.s32.totalorder 0, 0
  // Predicated region
  $region14: #{moves_forward.6} parent=0 // pred_check
    %p16 = pneg %p15
  $region15: #{moves_forward.6} parent=0 // pred_check_branch
    %18 = sbr.rel (%p16) target = $region17
  $region16: #{moves_forward.6} parent=0 // pred_region
    %19 = vst [vmem:[#allocation2] sm:$0xff] 0.0
    %20 = vst [vmem:[#allocation2 + $0x8] sm:$0xff] 0.0
    %21 = vst [vmem:[#allocation2 + $0x10] sm:$0xff] 0.0
    %22 = vst [vmem:[#allocation2 + $0x18] sm:$0xff] 0.0
  $region17: #{moves_forward.6} parent=0 // pred_fallthru
    _
  %v23 = vld [vmem:[#allocation2] sm:$0xff]
  %v24 = vld [vmem:[#allocation2 + $0x8] sm:$0xff]
  %v25 = vld [vmem:[#allocation2 + $0x10] sm:$0xff]
  %v26 = vld [vmem:[#allocation2 + $0x18] sm:$0xff]
  %v27 = vld [vmem:[%s0] sm:$0xff]
  %v28 = vld [vmem:[%s0 + $0x8] sm:$0xf]
  %v29 = vld [vmem:[%s0 + $0xc] sm:$0xff]
  %v30 = vld [vmem:[%s0 + $0x14] sm:$0xf]
  %v31 = vld [vmem:[%s0 + $0x18] sm:$0xff]
  %v32 = vld [vmem:[%s0 + $0x20] sm:$0xf]
  %v33 = vld [vmem:[%s0 + $0x24] sm:$0xff]
  %v34 = vld [vmem:[%s0 + $0x2c] sm:$0xf]
  %v35 = vld [vmem:[%s1] sm:$0xf]
  %v36 = vld [vmem:[%s1 + $0x4] sm:$0xf]
  %v37 = vld [vmem:[%s1 + $0x8] sm:$0xf]
  %v38 = vld [vmem:[%s1 + $0xc] sm:$0xf]
  %v39 = vld [vmem:[%s1 + $0x10] sm:$0xf]
  %v40 = vld [vmem:[%s1 + $0x14] sm:$0xf]
  %v41 = vld [vmem:[%s1 + $0x18] sm:$0xf]
  %v42 = vld [vmem:[%s1 + $0x1c] sm:$0xf]
  %v43 = vld [vmem:[%s1 + $0x20] sm:$0xf]
  %v44 = vld [vmem:[%s1 + $0x24] sm:$0xf]
  %v45 = vld [vmem:[%s1 + $0x28] sm:$0xf]
  %v46 = vld [vmem:[%s1 + $0x2c] sm:$0xf]
  %v47 = vld [vmem:[%s1 + $0x30] sm:$0xf]
  %v48 = vld [vmem:[%s1 + $0x34] sm:$0xf]
  %v49 = vld [vmem:[%s1 + $0x38] sm:$0xf]
  %v50 = vld [vmem:[%s1 + $0x3c] sm:$0xf]
  %v51 = vld [vmem:[%s1 + $0x40] sm:$0xf]
  %v52 = vld [vmem:[%s1 + $0x44] sm:$0xf]
  %v53 = vld [vmem:[%s1 + $0x48] sm:$0xf]
  %v54 = vld [vmem:[%s1 + $0x4c] sm:$0xf]
  %v55 = vld [vmem:[%s1 + $0x50] sm:$0xf]
  %v56 = vld [vmem:[%s1 + $0x54] sm:$0xf]
  %v57 = vld [vmem:[%s1 + $0x58] sm:$0xf]
  %v58 = vld [vmem:[%s1 + $0x5c] sm:$0xf]
  %v59 = vld [vmem:[%s1 + $0x60] sm:$0xf]
  %v60 = vld [vmem:[%s1 + $0x64] sm:$0xf]
  %v61 = vld [vmem:[%s1 + $0x68] sm:$0xf]
  %v62 = vld [vmem:[%s1 + $0x6c] sm:$0xf]
  %v63 = vld [vmem:[%s1 + $0x70] sm:$0xf]
  %v64 = vld [vmem:[%s1 + $0x74] sm:$0xf]
  %v65 = vld [vmem:[%s1 + $0x78] sm:$0xf]
  %v66 = vld [vmem:[%s1 + $0x7c] sm:$0xf]
  %v67 = vld [vmem:[%s1 + $0x80] sm:$0xf]
  %v68 = vld [vmem:[%s1 + $0x84] sm:$0xf]
  %v69 = vld [vmem:[%s1 + $0x88] sm:$0xf]
  %v70 = vld [vmem:[%s1 + $0x8c] sm:$0xf]
  %v71 = vld [vmem:[%s1 + $0x90] sm:$0xf]
  %v72 = vld [vmem:[%s1 + $0x94] sm:$0xf]
  %v73 = vld [vmem:[%s1 + $0x98] sm:$0xf]
  %v74 = vld [vmem:[%s1 + $0x9c] sm:$0xf]
  %v75 = vld [vmem:[%s1 + $0xa0] sm:$0xf]
  %v76 = vld [vmem:[%s1 + $0xa4] sm:$0xf]
  %v77 = vld [vmem:[%s1 + $0xa8] sm:$0xf]
  %v78 = vld [vmem:[%s1 + $0xac] sm:$0xf]
  %v79 = vld [vmem:[%s1 + $0xb0] sm:$0xf]
  %v80 = vld [vmem:[%s1 + $0xb4] sm:$0xf]
  %v81 = vld [vmem:[%s1 + $0xb8] sm:$0xf]
  %v82 = vld [vmem:[%s1 + $0xbc] sm:$0xf]
  %v91 = vunpack.c.l.b16 %v27
  %v92 = vunpack.c.h.b16 %v27
  %v93 = vunpack.c.l.b16 %v28
  %v94 = vunpack.c.l.b16 %v29
  %v95 = vunpack.c.h.b16 %v29
  %v96 = vunpack.c.l.b16 %v30
  %v97 = vunpack.c.l.b16 %v31
  %v98 = vunpack.c.h.b16 %v31
  %v99 = vunpack.c.l.b16 %v32
  %v100 = vunpack.c.l.b16 %v33
  %v101 = vunpack.c.h.b16 %v33
  %v102 = vunpack.c.l.b16 %v34
  %v103 = vpack.c.b16 %v94, %v91
  %v104 = vpack.c.b16 %v95, %v92
  %v105 = vpack.c.b16 %v96, %v93
  %v106 = vpack.c.b16 %v100, %v97
  %v107 = vpack.c.b16 %v101, %v98
  %v108 = vpack.c.b16 %v102, %v99
  %v163 = vunpack.c.l.b16 %v35
  %v164 = vunpack.c.l.b16 %v36
  %v165 = vunpack.c.l.b16 %v37
  %v166 = vunpack.c.l.b16 %v38
  %v167 = vunpack.c.l.b16 %v39
  %v168 = vunpack.c.l.b16 %v40
  %v169 = vunpack.c.l.b16 %v41
  %v170 = vunpack.c.l.b16 %v42
  %v171 = vunpack.c.l.b16 %v43
  %v172 = vunpack.c.l.b16 %v44
  %v173 = vunpack.c.l.b16 %v45
  %v174 = vunpack.c.l.b16 %v46
  %v175 = vunpack.c.l.b16 %v47
  %v176 = vunpack.c.l.b16 %v48
  %v177 = vunpack.c.l.b16 %v49
  %v178 = vunpack.c.l.b16 %v50
  %v179 = vunpack.c.l.b16 %v51
  %v180 = vunpack.c.l.b16 %v52
  %v181 = vunpack.c.l.b16 %v53
  %v182 = vunpack.c.l.b16 %v54
  %v183 = vunpack.c.l.b16 %v55
  %v184 = vunpack.c.l.b16 %v56
  %v185 = vunpack.c.l.b16 %v57
  %v186 = vunpack.c.l.b16 %v58
  %v187 = vunpack.c.l.b16 %v59
  %v188 = vunpack.c.l.b16 %v60
  %v189 = vunpack.c.l.b16 %v61
  %v190 = vunpack.c.l.b16 %v62
  %v191 = vunpack.c.l.b16 %v63
  %v192 = vunpack.c.l.b16 %v64
  %v193 = vunpack.c.l.b16 %v65
  %v194 = vunpack.c.l.b16 %v66
  %v195 = vunpack.c.l.b16 %v67
  %v196 = vunpack.c.l.b16 %v68
  %v197 = vunpack.c.l.b16 %v69
  %v198 = vunpack.c.l.b16 %v70
  %v199 = vunpack.c.l.b16 %v71
  %v200 = vunpack.c.l.b16 %v72
  %v201 = vunpack.c.l.b16 %v73
  %v202 = vunpack.c.l.b16 %v74
  %v203 = vunpack.c.l.b16 %v75
  %v204 = vunpack.c.l.b16 %v76
  %v205 = vunpack.c.l.b16 %v77
  %v206 = vunpack.c.l.b16 %v78
  %v207 = vunpack.c.l.b16 %v79
  %v208 = vunpack.c.l.b16 %v80
  %v209 = vunpack.c.l.b16 %v81
  %v210 = vunpack.c.l.b16 %v82
  %v211 = vpack.c.b16 %v164, %v163
  %v212 = vpack.c.b16 %v166, %v165
  %v213 = vpack.c.b16 %v168, %v167
  %v214 = vpack.c.b16 %v170, %v169
  %v215 = vpack.c.b16 %v172, %v171
  %v216 = vpack.c.b16 %v174, %v173
  %v217 = vpack.c.b16 %v176, %v175
  %v218 = vpack.c.b16 %v178, %v177
  %v219 = vpack.c.b16 %v180, %v179
  %v220 = vpack.c.b16 %v182, %v181
  %v221 = vpack.c.b16 %v184, %v183
  %v222 = vpack.c.b16 %v186, %v185
  %v223 = vpack.c.b16 %v188, %v187
  %v224 = vpack.c.b16 %v190, %v189
  %v225 = vpack.c.b16 %v192, %v191
  %v226 = vpack.c.b16 %v194, %v193
  %v227 = vpack.c.b16 %v196, %v195
  %v228 = vpack.c.b16 %v198, %v197
  %v229 = vpack.c.b16 %v200, %v199
  %v230 = vpack.c.b16 %v202, %v201
  %v231 = vpack.c.b16 %v204, %v203
  %v232 = vpack.c.b16 %v206, %v205
  %v233 = vpack.c.b16 %v208, %v207
  %v234 = vpack.c.b16 %v210, %v209
  %259 = vmatprep.subr.bf16.mxu0 0
  %260 = vmatpush1.bf16.msra.mxu0 %v218
  %261 = vmatprep.subr.bf16.mxu0 0
  %262 = vmatpush1.bf16.msra.mxu0 %v217
  %263 = vmatprep.subr.bf16.mxu0 0
  %264 = vmatpush1.bf16.msra.mxu0 %v216
  %265 = vmatprep.subr.bf16.mxu0 0
  %266 = vmatpush1.bf16.msra.mxu0 %v215
  %267 = vmatprep.subr.bf16.mxu0 0
  %268 = vmatpush1.bf16.msra.mxu0 %v214
  %269 = vmatprep.subr.bf16.mxu0 0
  %270 = vmatpush1.bf16.msra.mxu0 %v213
  %271 = vmatprep.subr.bf16.mxu0 0
  %272 = vmatpush1.bf16.msra.mxu0 %v212
  %273 = vmatprep.subr.bf16.mxu0 0
  %274 = vmatpush1.bf16.msra.mxu0 %v211
  %275 = vmatprep.subr.bf16.mxu0 0
  %276 = vmatpush2.bf16.msra.mxu0 %v226
  %277 = vmatprep.subr.bf16.mxu0 0
  %278 = vmatpush2.bf16.msra.mxu0 %v225
  %279 = vmatprep.subr.bf16.mxu0 0
  %280 = vmatpush2.bf16.msra.mxu0 %v224
  %281 = vmatprep.subr.bf16.mxu0 0
  %282 = vmatpush2.bf16.msra.mxu0 %v223
  %283 = vmatprep.subr.bf16.mxu0 0
  %284 = vmatpush2.bf16.msra.mxu0 %v222
  %285 = vmatprep.subr.bf16.mxu0 0
  %286 = vmatpush2.bf16.msra.mxu0 %v221
  %287 = vmatprep.subr.bf16.mxu0 0
  %288 = vmatpush2.bf16.msra.mxu0 %v220
  %289 = vmatprep.subr.bf16.mxu0 0
  %290 = vmatpush2.bf16.msra.mxu0 %v219
  %291 = vmatprep.mubr.bf16.mxu0 %v104
  %292 = vmatmul.mubr.bf16.gmra.mxu0 %v103
  %v293 = vpop.f32.mrf.mxu0
  %v294 = vadd.f32 0.0, %v293
  %v295 = vpop.f32.mrf.mxu0
  %v296 = vpop.f32.mrf.mxu0
  %v297 = vadd.f32 0.0, %v296
  %v298 = vpop.f32.mrf.mxu0
  %299 = vmatprep.mubr.bf16.mxu0 %v107
  %300 = vmatmul.mubr.bf16.gmra.mxu0 %v106
  %v301 = vpop.f32.mrf.mxu0
  %v302 = vadd.f32 0.0, %v301
  %v303 = vpop.f32.mrf.mxu0
  %v304 = vpop.f32.mrf.mxu0
  %v305 = vadd.f32 0.0, %v304
  %v306 = vpop.f32.mrf.mxu0
  %307 = vdwg.mxu0
  %308 = vmatprep.subr.bf16.mxu0 0
  %309 = vmatpush1.bf16.msra.mxu0 %v234
  %310 = vmatprep.subr.bf16.mxu0 0
  %311 = vmatpush1.bf16.msra.mxu0 %v233
  %312 = vmatprep.subr.bf16.mxu0 0
  %313 = vmatpush1.bf16.msra.mxu0 %v232
  %314 = vmatprep.subr.bf16.mxu0 0
  %315 = vmatpush1.bf16.msra.mxu0 %v231
  %316 = vmatprep.subr.bf16.mxu0 0
  %317 = vmatpush1.bf16.msra.mxu0 %v230
  %318 = vmatprep.subr.bf16.mxu0 0
  %319 = vmatpush1.bf16.msra.mxu0 %v229
  %320 = vmatprep.subr.bf16.mxu0 0
  %321 = vmatpush1.bf16.msra.mxu0 %v228
  %322 = vmatprep.subr.bf16.mxu0 0
  %323 = vmatpush1.bf16.msra.mxu0 %v227
  %324 = vmatprep.subr.bf16.mxu0 0
  %325 = vmatpush2.bf16.msra.mxu0 0
  %326 = vmatprep.subr.bf16.mxu0 0
  %327 = vmatpush2.bf16.msra.mxu0 0
  %328 = vmatprep.subr.bf16.mxu0 0
  %329 = vmatpush2.bf16.msra.mxu0 0
  %330 = vmatprep.subr.bf16.mxu0 0
  %331 = vmatpush2.bf16.msra.mxu0 0
  %332 = vmatprep.subr.bf16.mxu0 0
  %333 = vmatpush2.bf16.msra.mxu0 0
  %334 = vmatprep.subr.bf16.mxu0 0
  %335 = vmatpush2.bf16.msra.mxu0 0
  %336 = vmatprep.subr.bf16.mxu0 0
  %337 = vmatpush2.bf16.msra.mxu0 0
  %338 = vmatprep.subr.bf16.mxu0 0
  %339 = vmatpush2.bf16.msra.mxu0 0
  %340 = vmatprep.mubr.bf16.mxu0 0
  %341 = vmatmul.mubr.bf16.gmra.mxu0 %v105
  %v342 = vpop.f32.mrf.mxu0
  %v343 = vadd.f32 %v294, %v342
  %v344 = vpop.f32.mrf.mxu0
  %v345 = vpop.f32.mrf.mxu0
  %v346 = vadd.f32 %v297, %v345
  %v347 = vpop.f32.mrf.mxu0
  %348 = vmatprep.mubr.bf16.mxu0 0
  %349 = vmatmul.mubr.bf16.gmra.mxu0 %v108
  %v350 = vpop.f32.mrf.mxu0
  %v351 = vadd.f32 %v302, %v350
  %v352 = vpop.f32.mrf.mxu0
  %v353 = vpop.f32.mrf.mxu0
  %v354 = vadd.f32 %v305, %v353
  %v355 = vpop.f32.mrf.mxu0
  %356 = vdwg.mxu0
  %v357 = vadd.f32 %v23, %v343
  %v358 = vadd.f32 %v24, %v346
  %v359 = vadd.f32 %v25, %v351
  %v360 = vadd.f32 %v26, %v354
  %361 = vst [vmem:[#allocation2] sm:$0xff] %v357
  %362 = vst [vmem:[#allocation2 + $0x8] sm:$0xff] %v358
  %363 = vst [vmem:[#allocation2 + $0x10] sm:$0xff] %v359
  %364 = vst [vmem:[#allocation2 + $0x18] sm:$0xff] %v360
  // Predicated region
  $region18: #{moves_forward.6} parent=0 // pred_check
    %p365 = pneg %p15
  $region19: #{moves_forward.6} parent=0 // pred_check_branch
    %367 = sbr.rel (%p365) target = $region21
  $region20: #{moves_forward.6} parent=0 // pred_region
    %v368 = vld [vmem:[#allocation2] sm:$0xff]
    %v369 = vld [vmem:[#allocation2 + $0x8] sm:$0xff]
    %v370 = vld [vmem:[#allocation2 + $0x10] sm:$0xff]
    %v371 = vld [vmem:[#allocation2 + $0x18] sm:$0xff]
    %v372 = vld [vmem:[%s2] sm:$0x1]
    %v374 = vlaneseq
    %v375 = vshrl.u32 %v374, 7
    %v376 = vsub.s32 0, %v375
    %v377 = vrot.slane %v372, %v376
    %v379 = vadd.f32 %v368, %v377
    %v380 = vadd.f32 %v369, %v377
    %v381 = vadd.f32 %v370, %v377
    %v382 = vadd.f32 %v371, %v377
    %v383 = vmax.f32 %v379, 0.0
    %v384 = vmax.f32 %v380, 0.0
    %v385 = vmax.f32 %v381, 0.0
    %v386 = vmax.f32 %v382, 0.0
    %387 = vst [vmem:[%s3] sm:$0xff] %v383
    %388 = vst [vmem:[%s3 + $0x8] sm:$0xff] %v384
    %389 = vst [vmem:[%s3 + $0x10] sm:$0xff] %v385
    %390 = vst [vmem:[%s3 + $0x18] sm:$0xff] %v386
  $region21: #{moves_forward.6} parent=0 // pred_fallthru
    _
  // Predicated region
  $region22: #{moves_forward.6} parent=0 // pred_check
    _
  $region23: #{moves_forward.6} parent=0 // pred_check_branch
    %392 = sbr.rel (0) target = $region25
  $region24: #{moves_forward.6} parent=0 // pred_region
    _
  $region25: #{moves_forward.6} parent=0 // pred_fallthru
    _
  // Predicated region
  $region26: #{moves_forward.6} parent=0 // pred_check
    _
  $region27: #{moves_forward.6} parent=0 // pred_check_branch
    %394 = sbr.rel (0) target = $region29
  $region28: #{moves_forward.6} parent=0 // pred_region
    _
  $region29: #{moves_forward.6} parent=0 // pred_fallthru
    _

// kernel: moves_forward.7
$region0: #{moves_forward.7}
  #allocation0 [shape = 'u32[]', space=smem, size = 0x4, offset = 0x4, fixed_abs, tag = 'smem constant byte address 0x4 - core index']
  #allocation1 [shape = 'u32[144,128]{1,0:T(1,128)}', space=vmem, size = 0x12000, scoped, tag = 'internal scratch']
  #allocation2 [shape = 'f32[32,128]{1,0:T(8,128)}', space=vmem, size = 0x4000, scoped, tag = 'scratch operand']
  %s0 = inlined_call_operand.vmem [shape: bf16[32,128], index: 0, kind: input, shape index: {}]
  %s1 = inlined_call_operand.vmem [shape: bf16[128,128], index: 1, kind: input, shape index: {}]
  %s2 = inlined_call_operand.vmem [shape: f32[1,128], index: 2, kind: input, shape index: {}]
  %s3 = inlined_call_operand.vmem [shape: f32[32,128], index: 3, kind: output, shape index: {}]
  %s4 = sld [smem:[#allocation0]]
  $region30: #{moves_forward.7} parent=0
    _
  %s6 = ssub.s32 1, %s4
  %s7 = scalar_select 0, %s6, %s4
  // Predicated region
  $region2: #{moves_forward.7} parent=0 // pred_check
    _
  $region3: #{moves_forward.7} parent=0 // pred_check_branch
    %9 = sbr.rel (0) target = $region5
  $region4: #{moves_forward.7} parent=0 // pred_region
    _
  $region5: #{moves_forward.7} parent=0 // pred_fallthru
    _
  // Predicated region
  $region6: #{moves_forward.7} parent=0 // pred_check
    _
  $region7: #{moves_forward.7} parent=0 // pred_check_branch
    %11 = sbr.rel (0) target = $region9
  $region8: #{moves_forward.7} parent=0 // pred_region
    _
  $region9: #{moves_forward.7} parent=0 // pred_fallthru
    _
  // Predicated region
  $region10: #{moves_forward.7} parent=0 // pred_check
    _
  $region11: #{moves_forward.7} parent=0 // pred_check_branch
    %13 = sbr.rel (0) target = $region13
  $region12: #{moves_forward.7} parent=0 // pred_region
    _
  $region13: #{moves_forward.7} parent=0 // pred_fallthru
    _
  %p15 = scmp.eq.s32.totalorder 0, 0
  // Predicated region
  $region14: #{moves_forward.7} parent=0 // pred_check
    %p16 = pneg %p15
  $region15: #{moves_forward.7} parent=0 // pred_check_branch
    %18 = sbr.rel (%p16) target = $region17
  $region16: #{moves_forward.7} parent=0 // pred_region
    %19 = vst [vmem:[#allocation2] sm:$0xff] 0.0
    %20 = vst [vmem:[#allocation2 + $0x8] sm:$0xff] 0.0
    %21 = vst [vmem:[#allocation2 + $0x10] sm:$0xff] 0.0
    %22 = vst [vmem:[#allocation2 + $0x18] sm:$0xff] 0.0
  $region17: #{moves_forward.7} parent=0 // pred_fallthru
    _
  %v23 = vld [vmem:[#allocation2] sm:$0xff]
  %v24 = vld [vmem:[#allocation2 + $0x8] sm:$0xff]
  %v25 = vld [vmem:[#allocation2 + $0x10] sm:$0xff]
  %v26 = vld [vmem:[#allocation2 + $0x18] sm:$0xff]
  %v27 = vld [vmem:[%s0] sm:$0xf]
  %v28 = vld [vmem:[%s0 + $0x4] sm:$0xf]
  %v29 = vld [vmem:[%s0 + $0x8] sm:$0xf]
  %v30 = vld [vmem:[%s0 + $0xc] sm:$0xf]
  %v31 = vld [vmem:[%s1] sm:$0xf]
  %v32 = vld [vmem:[%s1 + $0x4] sm:$0xf]
  %v33 = vld [vmem:[%s1 + $0x8] sm:$0xf]
  %v34 = vld [vmem:[%s1 + $0xc] sm:$0xf]
  %v35 = vld [vmem:[%s1 + $0x10] sm:$0xf]
  %v36 = vld [vmem:[%s1 + $0x14] sm:$0xf]
  %v37 = vld [vmem:[%s1 + $0x18] sm:$0xf]
  %v38 = vld [vmem:[%s1 + $0x1c] sm:$0xf]
  %v39 = vld [vmem:[%s1 + $0x20] sm:$0xf]
  %v40 = vld [vmem:[%s1 + $0x24] sm:$0xf]
  %v41 = vld [vmem:[%s1 + $0x28] sm:$0xf]
  %v42 = vld [vmem:[%s1 + $0x2c] sm:$0xf]
  %v43 = vld [vmem:[%s1 + $0x30] sm:$0xf]
  %v44 = vld [vmem:[%s1 + $0x34] sm:$0xf]
  %v45 = vld [vmem:[%s1 + $0x38] sm:$0xf]
  %v46 = vld [vmem:[%s1 + $0x3c] sm:$0xf]
  %v51 = vunpack.c.l.b16 %v27
  %v52 = vunpack.c.l.b16 %v28
  %v53 = vunpack.c.l.b16 %v29
  %v54 = vunpack.c.l.b16 %v30
  %v55 = vpack.c.b16 %v52, %v51
  %v56 = vpack.c.b16 %v54, %v53
  %v75 = vunpack.c.l.b16 %v31
  %v76 = vunpack.c.l.b16 %v32
  %v77 = vunpack.c.l.b16 %v33
  %v78 = vunpack.c.l.b16 %v34
  %v79 = vunpack.c.l.b16 %v35
  %v80 = vunpack.c.l.b16 %v36
  %v81 = vunpack.c.l.b16 %v37
  %v82 = vunpack.c.l.b16 %v38
  %v83 = vunpack.c.l.b16 %v39
  %v84 = vunpack.c.l.b16 %v40
  %v85 = vunpack.c.l.b16 %v41
  %v86 = vunpack.c.l.b16 %v42
  %v87 = vunpack.c.l.b16 %v43
  %v88 = vunpack.c.l.b16 %v44
  %v89 = vunpack.c.l.b16 %v45
  %v90 = vunpack.c.l.b16 %v46
  %v91 = vpack.c.b16 %v76, %v75
  %v92 = vpack.c.b16 %v78, %v77
  %v93 = vpack.c.b16 %v80, %v79
  %v94 = vpack.c.b16 %v82, %v81
  %v95 = vpack.c.b16 %v84, %v83
  %v96 = vpack.c.b16 %v86, %v85
  %v97 = vpack.c.b16 %v88, %v87
  %v98 = vpack.c.b16 %v90, %v89
  %107 = vmatprep.subr.bf16.mxu0 0
  %108 = vmatpush1.bf16.msra.mxu0 %v98
  %109 = vmatprep.subr.bf16.mxu0 0
  %110 = vmatpush1.bf16.msra.mxu0 %v97
  %111 = vmatprep.subr.bf16.mxu0 0
  %112 = vmatpush1.bf16.msra.mxu0 %v96
  %113 = vmatprep.subr.bf16.mxu0 0
  %114 = vmatpush1.bf16.msra.mxu0 %v95
  %115 = vmatprep.subr.bf16.mxu0 0
  %116 = vmatpush1.bf16.msra.mxu0 %v94
  %117 = vmatprep.subr.bf16.mxu0 0
  %118 = vmatpush1.bf16.msra.mxu0 %v93
  %119 = vmatprep.subr.bf16.mxu0 0
  %120 = vmatpush1.bf16.msra.mxu0 %v92
  %121 = vmatprep.subr.bf16.mxu0 0
  %122 = vmatpush1.bf16.msra.mxu0 %v91
  %123 = vmatprep.subr.bf16.mxu0 0
  %124 = vmatpush2.bf16.msra.mxu0 0
  %125 = vmatprep.subr.bf16.mxu0 0
  %126 = vmatpush2.bf16.msra.mxu0 0
  %127 = vmatprep.subr.bf16.mxu0 0
  %128 = vmatpush2.bf16.msra.mxu0 0
  %129 = vmatprep.subr.bf16.mxu0 0
  %130 = vmatpush2.bf16.msra.mxu0 0
  %131 = vmatprep.subr.bf16.mxu0 0
  %132 = vmatpush2.bf16.msra.mxu0 0
  %133 = vmatprep.subr.bf16.mxu0 0
  %134 = vmatpush2.bf16.msra.mxu0 0
  %135 = vmatprep.subr.bf16.mxu0 0
  %136 = vmatpush2.bf16.msra.mxu0 0
  %137 = vmatprep.subr.bf16.mxu0 0
  %138 = vmatpush2.bf16.msra.mxu0 0
  %139 = vmatprep.mubr.bf16.mxu0 0
  %140 = vmatmul.mubr.bf16.gmra.mxu0 %v55
  %v141 = vpop.f32.mrf.mxu0
  %v142 = vadd.f32 0.0, %v141
  %v143 = vpop.f32.mrf.mxu0
  %v144 = vpop.f32.mrf.mxu0
  %v145 = vadd.f32 0.0, %v144
  %v146 = vpop.f32.mrf.mxu0
  %147 = vmatprep.mubr.bf16.mxu0 0
  %148 = vmatmul.mubr.bf16.gmra.mxu0 %v56
  %v149 = vpop.f32.mrf.mxu0
  %v150 = vadd.f32 0.0, %v149
  %v151 = vpop.f32.mrf.mxu0
  %v152 = vpop.f32.mrf.mxu0
  %v153 = vadd.f32 0.0, %v152
  %v154 = vpop.f32.mrf.mxu0
  %155 = vdwg.mxu0
  %v156 = vadd.f32 %v23, %v142
  %v157 = vadd.f32 %v24, %v145
  %v158 = vadd.f32 %v25, %v150
  %v159 = vadd.f32 %v26, %v153
  %160 = vst [vmem:[#allocation2] sm:$0xff] %v156
  %161 = vst [vmem:[#allocation2 + $0x8] sm:$0xff] %v157
  %162 = vst [vmem:[#allocation2 + $0x10] sm:$0xff] %v158
  %163 = vst [vmem:[#allocation2 + $0x18] sm:$0xff] %v159
  // Predicated region
  $region18: #{moves_forward.7} parent=0 // pred_check
    %p164 = pneg %p15
  $region19: #{moves_forward.7} parent=0 // pred_check_branch
    %166 = sbr.rel (%p164) target = $region21
  $region20: #{moves_forward.7} parent=0 // pred_region
    %v167 = vld [vmem:[#allocation2] sm:$0xff]
    %v168 = vld [vmem:[#allocation2 + $0x8] sm:$0xff]
    %v169 = vld [vmem:[#allocation2 + $0x10] sm:$0xff]
    %v170 = vld [vmem:[#allocation2 + $0x18] sm:$0xff]
    %v171 = vld [vmem:[%s2] sm:$0x1]
    %v173 = vlaneseq
    %v174 = vshrl.u32 %v173, 7
    %v175 = vsub.s32 0, %v174
    %v176 = vrot.slane %v171, %v175
    %v178 = vadd.f32 %v167, %v176
    %v179 = vadd.f32 %v168, %v176
    %v180 = vadd.f32 %v169, %v176
    %v181 = vadd.f32 %v170, %v176
    %182 = vst [vmem:[%s3] sm:$0xff] %v178
    %183 = vst [vmem:[%s3 + $0x8] sm:$0xff] %v179
    %184 = vst [vmem:[%s3 + $0x10] sm:$0xff] %v180
    %185 = vst [vmem:[%s3 + $0x18] sm:$0xff] %v181
  $region21: #{moves_forward.7} parent=0 // pred_fallthru
    _
  // Predicated region
  $region22: #{moves_forward.7} parent=0 // pred_check
    _
  $region23: #{moves_forward.7} parent=0 // pred_check_branch
    %187 = sbr.rel (0) target = $region25
  $region24: #{moves_forward.7} parent=0 // pred_region
    _
  $region25: #{moves_forward.7} parent=0 // pred_fallthru
    _
  // Predicated region
  $region26: #{moves_forward.7} parent=0 // pred_check
    _
  $region27: #{moves_forward.7} parent=0 // pred_check_branch
    %189 = sbr.rel (0) target = $region29
  $region28: #{moves_forward.7} parent=0 // pred_region
    _
  $region29: #{moves_forward.7} parent=0 // pred_fallthru
    _

// kernel: moves_forward.8
$region0: #{moves_forward.8}
  #allocation0 [shape = 'u32[]', space=smem, size = 0x4, offset = 0x4, fixed_abs, tag = 'smem constant byte address 0x4 - core index']
  #allocation1 [shape = 'u32[144,128]{1,0:T(1,128)}', space=vmem, size = 0x12000, scoped, tag = 'internal scratch']
  #allocation2 [shape = 'f32[128,128]{1,0:T(8,128)}', space=vmem, size = 0x10000, scoped, tag = 'scratch operand']
  %s0 = inlined_call_operand.vmem [shape: f32[128,128], index: 0, kind: input, shape index: {}]
  %s1 = inlined_call_operand.vmem [shape: f32[128,128], index: 1, kind: input, shape index: {}]
  %s2 = inlined_call_operand.vmem [shape: f32[1,128], index: 2, kind: input, shape index: {}]
  %s3 = inlined_call_operand.vmem [shape: f32[128,128], index: 3, kind: output, shape index: {}]
  %s4 = sld [smem:[#allocation0]]
  $region30: #{moves_forward.8} parent=0
    _
  %s6 = ssub.s32 1, %s4
  %s7 = scalar_select 0, %s6, %s4
  // Predicated region
  $region2: #{moves_forward.8} parent=0 // pred_check
    _
  $region3: #{moves_forward.8} parent=0 // pred_check_branch
    %9 = sbr.rel (0) target = $region5
  $region4: #{moves_forward.8} parent=0 // pred_region
    _
  $region5: #{moves_forward.8} parent=0 // pred_fallthru
    _
  // Predicated region
  $region6: #{moves_forward.8} parent=0 // pred_check
    _
  $region7: #{moves_forward.8} parent=0 // pred_check_branch
    %11 = sbr.rel (0) target = $region9
  $region8: #{moves_forward.8} parent=0 // pred_region
    _
  $region9: #{moves_forward.8} parent=0 // pred_fallthru
    _
  // Predicated region
  $region10: #{moves_forward.8} parent=0 // pred_check
    _
  $region11: #{moves_forward.8} parent=0 // pred_check_branch
    %13 = sbr.rel (0) target = $region13
  $region12: #{moves_forward.8} parent=0 // pred_region
    _
  $region13: #{moves_forward.8} parent=0 // pred_fallthru
    _
  %p14 = scmp.eq.s32.totalorder 0, 0
  // Predicated region
  $region14: #{moves_forward.8} parent=0 // pred_check
    %p15 = pneg %p14
  $region15: #{moves_forward.8} parent=0 // pred_check_branch
    %17 = sbr.rel (%p15) target = $region17
  $region16: #{moves_forward.8} parent=0 // pred_region
    %18 = vst [vmem:[#allocation2] sm:$0xff] 0.0
    %19 = vst [vmem:[#allocation2 + $0x8] sm:$0xff] 0.0
    %20 = vst [vmem:[#allocation2 + $0x10] sm:$0xff] 0.0
    %21 = vst [vmem:[#allocation2 + $0x18] sm:$0xff] 0.0
    %22 = vst [vmem:[#allocation2 + $0x20] sm:$0xff] 0.0
    %23 = vst [vmem:[#allocation2 + $0x28] sm:$0xff] 0.0
    %24 = vst [vmem:[#allocation2 + $0x30] sm:$0xff] 0.0
    %25 = vst [vmem:[#allocation2 + $0x38] sm:$0xff] 0.0
    %26 = vst [vmem:[#allocation2 + $0x40] sm:$0xff] 0.0
    %27 = vst [vmem:[#allocation2 + $0x48] sm:$0xff] 0.0
    %28 = vst [vmem:[#allocation2 + $0x50] sm:$0xff] 0.0
    %29 = vst [vmem:[#allocation2 + $0x58] sm:$0xff] 0.0
    %30 = vst [vmem:[#allocation2 + $0x60] sm:$0xff] 0.0
    %31 = vst [vmem:[#allocation2 + $0x68] sm:$0xff] 0.0
    %32 = vst [vmem:[#allocation2 + $0x70] sm:$0xff] 0.0
    %33 = vst [vmem:[#allocation2 + $0x78] sm:$0xff] 0.0
  $region17: #{moves_forward.8} parent=0 // pred_fallthru
    _
  %v34 = vld [vmem:[#allocation2] sm:$0xff]
  %v35 = vld [vmem:[#allocation2 + $0x8] sm:$0xff]
  %v36 = vld [vmem:[#allocation2 + $0x10] sm:$0xff]
  %v37 = vld [vmem:[#allocation2 + $0x18] sm:$0xff]
  %v38 = vld [vmem:[#allocation2 + $0x20] sm:$0xff]
  %v39 = vld [vmem:[#allocation2 + $0x28] sm:$0xff]
  %v40 = vld [vmem:[#allocation2 + $0x30] sm:$0xff]
  %v41 = vld [vmem:[#allocation2 + $0x38] sm:$0xff]
  %v42 = vld [vmem:[#allocation2 + $0x40] sm:$0xff]
  %v43 = vld [vmem:[#allocation2 + $0x48] sm:$0xff]
  %v44 = vld [vmem:[#allocation2 + $0x50] sm:$0xff]
  %v45 = vld [vmem:[#allocation2 + $0x58] sm:$0xff]
  %v46 = vld [vmem:[#allocation2 + $0x60] sm:$0xff]
  %v47 = vld [vmem:[#allocation2 + $0x68] sm:$0xff]
  %v48 = vld [vmem:[#allocation2 + $0x70] sm:$0xff]
  %v49 = vld [vmem:[#allocation2 + $0x78] sm:$0xff]
  %v50 = vld [vmem:[%s0] sm:$0xff]
  %v51 = vld [vmem:[%s0 + $0x8] sm:$0xff]
  %v52 = vld [vmem:[%s0 + $0x10] sm:$0xff]
  %v53 = vld [vmem:[%s0 + $0x18] sm:$0xff]
  %v54 = vld [vmem:[%s0 + $0x20] sm:$0xff]
  %v55 = vld [vmem:[%s0 + $0x28] sm:$0xff]
  %v56 = vld [vmem:[%s0 + $0x30] sm:$0xff]
  %v57 = vld [vmem:[%s0 + $0x38] sm:$0xff]
  %v58 = vld [vmem:[%s0 + $0x40] sm:$0xff]
  %v59 = vld [vmem:[%s0 + $0x48] sm:$0xff]
  %v60 = vld [vmem:[%s0 + $0x50] sm:$0xff]
  %v61 = vld [vmem:[%s0 + $0x58] sm:$0xff]
  %v62 = vld [vmem:[%s0 + $0x60] sm:$0xff]
  %v63 = vld [vmem:[%s0 + $0x68] sm:$0xff]
  %v64 = vld [vmem:[%s0 + $0x70] sm:$0xff]
  %v65 = vld [vmem:[%s0 + $0x78] sm:$0xff]
  %v66 = vld [vmem:[%s1] sm:$0xff]
  %v67 = vld [vmem:[%s1 + $0x8] sm:$0xff]
  %v68 = vld [vmem:[%s1 + $0x10] sm:$0xff]
  %v69 = vld [vmem:[%s1 + $0x18] sm:$0xff]
  %v70 = vld [vmem:[%s1 + $0x20] sm:$0xff]
  %v71 = vld [vmem:[%s1 + $0x28] sm:$0xff]
  %v72 = vld [vmem:[%s1 + $0x30] sm:$0xff]
  %v73 = vld [vmem:[%s1 + $0x38] sm:$0xff]
  %v74 = vld [vmem:[%s1 + $0x40] sm:$0xff]
  %v75 = vld [vmem:[%s1 + $0x48] sm:$0xff]
  %v76 = vld [vmem:[%s1 + $0x50] sm:$0xff]
  %v77 = vld [vmem:[%s1 + $0x58] sm:$0xff]
  %v78 = vld [vmem:[%s1 + $0x60] sm:$0xff]
  %v79 = vld [vmem:[%s1 + $0x68] sm:$0xff]
  %v80 = vld [vmem:[%s1 + $0x70] sm:$0xff]
  %v81 = vld [vmem:[%s1 + $0x78] sm:$0xff]
  %82 = vmatprep.subr.mxu0 0.0
  %83 = vmatpush1.msra.mxu0 %v81
  %84 = vmatprep.subr.mxu0 0.0
  %85 = vmatpush1.msra.mxu0 %v80
  %86 = vmatprep.subr.mxu0 0.0
  %87 = vmatpush1.msra.mxu0 %v79
  %88 = vmatprep.subr.mxu0 0.0
  %89 = vmatpush1.msra.mxu0 %v78
  %90 = vmatprep.subr.mxu0 0.0
  %91 = vmatpush1.msra.mxu0 %v77
  %92 = vmatprep.subr.mxu0 0.0
  %93 = vmatpush1.msra.mxu0 %v76
  %94 = vmatprep.subr.mxu0 0.0
  %95 = vmatpush1.msra.mxu0 %v75
  %96 = vmatprep.subr.mxu0 0.0
  %97 = vmatpush1.msra.mxu0 %v74
  %98 = vmatprep.subr.mxu0 0.0
  %99 = vmatpush1.msra.mxu0 %v73
  %100 = vmatprep.subr.mxu0 0.0
  %101 = vmatpush1.msra.mxu0 %v72
  %102 = vmatprep.subr.mxu0 0.0
  %103 = vmatpush1.msra.mxu0 %v71
  %104 = vmatprep.subr.mxu0 0.0
  %105 = vmatpush1.msra.mxu0 %v70
  %106 = vmatprep.subr.mxu0 0.0
  %107 = vmatpush1.msra.mxu0 %v69
  %108 = vmatprep.subr.mxu0 0.0
  %109 = vmatpush1.msra.mxu0 %v68
  %110 = vmatprep.subr.mxu0 0.0
  %111 = vmatpush1.msra.mxu0 %v67
  %112 = vmatprep.subr.mxu0 0.0
  %113 = vmatpush1.msra.mxu0 %v66
  %114 = vmatprep.subr.mxu0 0.0
  %115 = vmatpush2.msra.mxu0 0.0
  %116 = vmatprep.subr.mxu0 0.0
  %117 = vmatpush2.msra.mxu0 0.0
  %118 = vmatprep.subr.mxu0 0.0
  %119 = vmatpush2.msra.mxu0 0.0
  %120 = vmatprep.subr.mxu0 0.0
  %121 = vmatpush2.msra.mxu0 0.0
  %122 = vmatprep.subr.mxu0 0.0
  %123 = vmatpush2.msra.mxu0 0.0
  %124 = vmatprep.subr.mxu0 0.0
  %125 = vmatpush2.msra.mxu0 0.0
  %126 = vmatprep.subr.mxu0 0.0
  %127 = vmatpush2.msra.mxu0 0.0
  %128 = vmatprep.subr.mxu0 0.0
  %129 = vmatpush2.msra.mxu0 0.0
  %130 = vmatprep.subr.mxu0 0.0
  %131 = vmatpush2.msra.mxu0 0.0
  %132 = vmatprep.subr.mxu0 0.0
  %133 = vmatpush2.msra.mxu0 0.0
  %134 = vmatprep.subr.mxu0 0.0
  %135 = vmatpush2.msra.mxu0 0.0
  %136 = vmatprep.subr.mxu0 0.0
  %137 = vmatpush2.msra.mxu0 0.0
  %138 = vmatprep.subr.mxu0 0.0
  %139 = vmatpush2.msra.mxu0 0.0
  %140 = vmatprep.subr.mxu0 0.0
  %141 = vmatpush2.msra.mxu0 0.0
  %142 = vmatprep.subr.mxu0 0.0
  %143 = vmatpush2.msra.mxu0 0.0
  %144 = vmatprep.subr.mxu0 0.0
  %145 = vmatpush2.msra.mxu0 0.0
  %146 = vmatprep.mubr.f32.mxu0 0.0
  %147 = vmatmul.mubr.f32.gmra.mxu0 %v50
  %v148 = vpop.f32.mrf.mxu0
  %v149 = vadd.f32 0.0, %v148
  %v150 = vpop.f32.mrf.mxu0
  %151 = vmatprep.mubr.f32.mxu0 0.0
  %152 = vmatmul.mubr.f32.gmra.mxu0 %v51
  %v153 = vpop.f32.mrf.mxu0
  %v154 = vadd.f32 0.0, %v153
  %v155 = vpop.f32.mrf.mxu0
  %156 = vmatprep.mubr.f32.mxu0 0.0
  %157 = vmatmul.mubr.f32.gmra.mxu0 %v52
  %v158 = vpop.f32.mrf.mxu0
  %v159 = vadd.f32 0.0, %v158
  %v160 = vpop.f32.mrf.mxu0
  %161 = vmatprep.mubr.f32.mxu0 0.0
  %162 = vmatmul.mubr.f32.gmra.mxu0 %v53
  %v163 = vpop.f32.mrf.mxu0
  %v164 = vadd.f32 0.0, %v163
  %v165 = vpop.f32.mrf.mxu0
  %166 = vmatprep.mubr.f32.mxu0 0.0
  %167 = vmatmul.mubr.f32.gmra.mxu0 %v54
  %v168 = vpop.f32.mrf.mxu0
  %v169 = vadd.f32 0.0, %v168
  %v170 = vpop.f32.mrf.mxu0
  %171 = vmatprep.mubr.f32.mxu0 0.0
  %172 = vmatmul.mubr.f32.gmra.mxu0 %v55
  %v173 = vpop.f32.mrf.mxu0
  %v174 = vadd.f32 0.0, %v173
  %v175 = vpop.f32.mrf.mxu0
  %176 = vmatprep.mubr.f32.mxu0 0.0
  %177 = vmatmul.mubr.f32.gmra.mxu0 %v56
  %v178 = vpop.f32.mrf.mxu0
  %v179 = vadd.f32 0.0, %v178
  %v180 = vpop.f32.mrf.mxu0
  %181 = vmatprep.mubr.f32.mxu0 0.0
  %182 = vmatmul.mubr.f32.gmra.mxu0 %v57
  %v183 = vpop.f32.mrf.mxu0
  %v184 = vadd.f32 0.0, %v183
  %v185 = vpop.f32.mrf.mxu0
  %186 = vmatprep.mubr.f32.mxu0 0.0
  %187 = vmatmul.mubr.f32.gmra.mxu0 %v58
  %v188 = vpop.f32.mrf.mxu0
  %v189 = vadd.f32 0.0, %v188
  %v190 = vpop.f32.mrf.mxu0
  %191 = vmatprep.mubr.f32.mxu0 0.0
  %192 = vmatmul.mubr.f32.gmra.mxu0 %v59
  %v193 = vpop.f32.mrf.mxu0
  %v194 = vadd.f32 0.0, %v193
  %v195 = vpop.f32.mrf.mxu0
  %196 = vmatprep.mubr.f32.mxu0 0.0
  %197 = vmatmul.mubr.f32.gmra.mxu0 %v60
  %v198 = vpop.f32.mrf.mxu0
  %v199 = vadd.f32 0.0, %v198
  %v200 = vpop.f32.mrf.mxu0
  %201 = vmatprep.mubr.f32.mxu0 0.0
  %202 = vmatmul.mubr.f32.gmra.mxu0 %v61
  %v203 = vpop.f32.mrf.mxu0
  %v204 = vadd.f32 0.0, %v203
  %v205 = vpop.f32.mrf.mxu0
  %206 = vmatprep.mubr.f32.mxu0 0.0
  %207 = vmatmul.mubr.f32.gmra.mxu0 %v62
  %v208 = vpop.f32.mrf.mxu0
  %v209 = vadd.f32 0.0, %v208
  %v210 = vpop.f32.mrf.mxu0
  %211 = vmatprep.mubr.f32.mxu0 0.0
  %212 = vmatmul.mubr.f32.gmra.mxu0 %v63
  %v213 = vpop.f32.mrf.mxu0
  %v214 = vadd.f32 0.0, %v213
  %v215 = vpop.f32.mrf.mxu0
  %216 = vmatprep.mubr.f32.mxu0 0.0
  %217 = vmatmul.mubr.f32.gmra.mxu0 %v64
  %v218 = vpop.f32.mrf.mxu0
  %v219 = vadd.f32 0.0, %v218
  %v220 = vpop.f32.mrf.mxu0
  %221 = vmatprep.mubr.f32.mxu0 0.0
  %222 = vmatmul.mubr.f32.gmra.mxu0 %v65
  %v223 = vpop.f32.mrf.mxu0
  %v224 = vadd.f32 0.0, %v223
  %v225 = vpop.f32.mrf.mxu0
  %226 = vdwg.mxu0
  %v227 = vadd.f32 %v34, %v149
  %v228 = vadd.f32 %v35, %v154
  %v229 = vadd.f32 %v36, %v159
  %v230 = vadd.f32 %v37, %v164
  %v231 = vadd.f32 %v38, %v169
  %v232 = vadd.f32 %v39, %v174
  %v233 = vadd.f32 %v40, %v179
  %v234 = vadd.f32 %v41, %v184
  %v235 = vadd.f32 %v42, %v189
  %v236 = vadd.f32 %v43, %v194
  %v237 = vadd.f32 %v44, %v199
  %v238 = vadd.f32 %v45, %v204
  %v239 = vadd.f32 %v46, %v209
  %v240 = vadd.f32 %v47, %v214
  %v241 = vadd.f32 %v48, %v219
  %v242 = vadd.f32 %v49, %v224
  %243 = vst [vmem:[#allocation2] sm:$0xff] %v227
  %244 = vst [vmem:[#allocation2 + $0x8] sm:$0xff] %v228
  %245 = vst [vmem:[#allocation2 + $0x10] sm:$0xff] %v229
  %246 = vst [vmem:[#allocation2 + $0x18] sm:$0xff] %v230
  %247 = vst [vmem:[#allocation2 + $0x20] sm:$0xff] %v231
  %248 = vst [vmem:[#allocation2 + $0x28] sm:$0xff] %v232
  %249 = vst [vmem:[#allocation2 + $0x30] sm:$0xff] %v233
  %250 = vst [vmem:[#allocation2 + $0x38] sm:$0xff] %v234
  %251 = vst [vmem:[#allocation2 + $0x40] sm:$0xff] %v235
  %252 = vst [vmem:[#allocation2 + $0x48] sm:$0xff] %v236
  %253 = vst [vmem:[#allocation2 + $0x50] sm:$0xff] %v237
  %254 = vst [vmem:[#allocation2 + $0x58] sm:$0xff] %v238
  %255 = vst [vmem:[#allocation2 + $0x60] sm:$0xff] %v239
  %256 = vst [vmem:[#allocation2 + $0x68] sm:$0xff] %v240
  %257 = vst [vmem:[#allocation2 + $0x70] sm:$0xff] %v241
  %258 = vst [vmem:[#allocation2 + $0x78] sm:$0xff] %v242
  // Predicated region
  $region18: #{moves_forward.8} parent=0 // pred_check
    %p259 = pneg %p14
  $region19: #{moves_forward.8} parent=0 // pred_check_branch
    %261 = sbr.rel (%p259) target = $region21
  $region20: #{moves_forward.8} parent=0 // pred_region
    %v262 = vld [vmem:[#allocation2] sm:$0xff]
    %v263 = vld [vmem:[#allocation2 + $0x8] sm:$0xff]
    %v264 = vld [vmem:[#allocation2 + $0x10] sm:$0xff]
    %v265 = vld [vmem:[#allocation2 + $0x18] sm:$0xff]
    %v266 = vld [vmem:[#allocation2 + $0x20] sm:$0xff]
    %v267 = vld [vmem:[#allocation2 + $0x28] sm:$0xff]
    %v268 = vld [vmem:[#allocation2 + $0x30] sm:$0xff]
    %v269 = vld [vmem:[#allocation2 + $0x38] sm:$0xff]
    %v270 = vld [vmem:[#allocation2 + $0x40] sm:$0xff]
    %v271 = vld [vmem:[#allocation2 + $0x48] sm:$0xff]
    %v272 = vld [vmem:[#allocation2 + $0x50] sm:$0xff]
    %v273 = vld [vmem:[#allocation2 + $0x58] sm:$0xff]
    %v274 = vld [vmem:[#allocation2 + $0x60] sm:$0xff]
    %v275 = vld [vmem:[#allocation2 + $0x68] sm:$0xff]
    %v276 = vld [vmem:[#allocation2 + $0x70] sm:$0xff]
    %v277 = vld [vmem:[#allocation2 + $0x78] sm:$0xff]
    %v278 = vld [vmem:[%s2] sm:$0x1]
    %v280 = vlaneseq
    %v281 = vshrl.u32 %v280, 7
    %v282 = vsub.s32 0, %v281
    %v283 = vrot.slane %v278, %v282
    %v285 = vadd.f32 %v262, %v283
    %v286 = vadd.f32 %v263, %v283
    %v287 = vadd.f32 %v264, %v283
    %v288 = vadd.f32 %v265, %v283
    %v289 = vadd.f32 %v266, %v283
    %v290 = vadd.f32 %v267, %v283
    %v291 = vadd.f32 %v268, %v283
    %v292 = vadd.f32 %v269, %v283
    %v293 = vadd.f32 %v270, %v283
    %v294 = vadd.f32 %v271, %v283
    %v295 = vadd.f32 %v272, %v283
    %v296 = vadd.f32 %v273, %v283
    %v297 = vadd.f32 %v274, %v283
    %v298 = vadd.f32 %v275, %v283
    %v299 = vadd.f32 %v276, %v283
    %v300 = vadd.f32 %v277, %v283
    %301 = vst [vmem:[%s3] sm:$0xff] %v285
    %302 = vst [vmem:[%s3 + $0x8] sm:$0xff] %v286
    %303 = vst [vmem:[%s3 + $0x10] sm:$0xff] %v287
    %304 = vst [vmem:[%s3 + $0x18] sm:$0xff] %v288
    %305 = vst [vmem:[%s3 + $0x20] sm:$0xff] %v289
    %306 = vst [vmem:[%s3 + $0x28] sm:$0xff] %v290
    %307 = vst [vmem:[%s3 + $0x30] sm:$0xff] %v291
    %308 = vst [vmem:[%s3 + $0x38] sm:$0xff] %v292
    %309 = vst [vmem:[%s3 + $0x40] sm:$0xff] %v293
    %310 = vst [vmem:[%s3 + $0x48] sm:$0xff] %v294
    %311 = vst [vmem:[%s3 + $0x50] sm:$0xff] %v295
    %312 = vst [vmem:[%s3 + $0x58] sm:$0xff] %v296
    %313 = vst [vmem:[%s3 + $0x60] sm:$0xff] %v297
    %314 = vst [vmem:[%s3 + $0x68] sm:$0xff] %v298
    %315 = vst [vmem:[%s3 + $0x70] sm:$0xff] %v299
    %316 = vst [vmem:[%s3 + $0x78] sm:$0xff] %v300
  $region21: #{moves_forward.8} parent=0 // pred_fallthru
    _
  // Predicated region
  $region22: #{moves_forward.8} parent=0 // pred_check
    _
  $region23: #{moves_forward.8} parent=0 // pred_check_branch
    %318 = sbr.rel (0) target = $region25
  $region24: #{moves_forward.8} parent=0 // pred_region
    _
  $region25: #{moves_forward.8} parent=0 // pred_fallthru
    _
  // Predicated region
  $region26: #{moves_forward.8} parent=0 // pred_check
    _
  $region27: #{moves_forward.8} parent=0 // pred_check_branch
    %320 = sbr.rel (0) target = $region29
  $region28: #{moves_forward.8} parent=0 // pred_region
    _
  $region29: #{moves_forward.8} parent=0 // pred_fallthru
    _

// kernel: moves_forward.9
$region0: #{moves_forward.9}
  #allocation0 [shape = 'u32[]', space=smem, size = 0x4, offset = 0x4, fixed_abs, tag = 'smem constant byte address 0x4 - core index']
  #allocation1 [shape = 'u32[144,128]{1,0:T(1,128)}', space=vmem, size = 0x12000, scoped, tag = 'internal scratch']
  #allocation2 [shape = 'f32[512,128]{1,0:T(8,128)}', space=vmem, size = 0x40000, scoped, tag = 'scratch operand']
  %s0 = inlined_call_operand.vmem [shape: f32[512,128], index: 0, kind: input, shape index: {}]
  %s1 = inlined_call_operand.vmem [shape: f32[128,128], index: 1, kind: input, shape index: {}]
  %s2 = inlined_call_operand.vmem [shape: f32[1,128], index: 2, kind: input, shape index: {}]
  %s3 = inlined_call_operand.vmem [shape: f32[512,128], index: 3, kind: output, shape index: {}]
  %s4 = sld [smem:[#allocation0]]
  $region30: #{moves_forward.9} parent=0
    _
  %s6 = ssub.s32 1, %s4
  %s7 = scalar_select 0, %s6, %s4
  // Predicated region
  $region2: #{moves_forward.9} parent=0 // pred_check
    _
  $region3: #{moves_forward.9} parent=0 // pred_check_branch
    %9 = sbr.rel (0) target = $region5
  $region4: #{moves_forward.9} parent=0 // pred_region
    _
  $region5: #{moves_forward.9} parent=0 // pred_fallthru
    _
  // Predicated region
  $region6: #{moves_forward.9} parent=0 // pred_check
    _
  $region7: #{moves_forward.9} parent=0 // pred_check_branch
    %11 = sbr.rel (0) target = $region9
  $region8: #{moves_forward.9} parent=0 // pred_region
    _
  $region9: #{moves_forward.9} parent=0 // pred_fallthru
    _
  // Predicated region
  $region10: #{moves_forward.9} parent=0 // pred_check
    _
  $region11: #{moves_forward.9} parent=0 // pred_check_branch
    %13 = sbr.rel (0) target = $region13
  $region12: #{moves_forward.9} parent=0 // pred_region
    _
  $region13: #{moves_forward.9} parent=0 // pred_fallthru
    _
  %p14 = scmp.eq.s32.totalorder 0, 0
  // Predicated region
  $region14: #{moves_forward.9} parent=0 // pred_check
    %p15 = pneg %p14
  $region15: #{moves_forward.9} parent=0 // pred_check_branch
    %17 = sbr.rel (%p15) target = $region17
  $region16: #{moves_forward.9} parent=0 // pred_region
    %18 = vst [vmem:[#allocation2] sm:$0xff] 0.0
    %19 = vst [vmem:[#allocation2 + $0x8] sm:$0xff] 0.0
    %20 = vst [vmem:[#allocation2 + $0x10] sm:$0xff] 0.0
    %21 = vst [vmem:[#allocation2 + $0x18] sm:$0xff] 0.0
    %22 = vst [vmem:[#allocation2 + $0x20] sm:$0xff] 0.0
    %23 = vst [vmem:[#allocation2 + $0x28] sm:$0xff] 0.0
    %24 = vst [vmem:[#allocation2 + $0x30] sm:$0xff] 0.0
    %25 = vst [vmem:[#allocation2 + $0x38] sm:$0xff] 0.0
    %26 = vst [vmem:[#allocation2 + $0x40] sm:$0xff] 0.0
    %27 = vst [vmem:[#allocation2 + $0x48] sm:$0xff] 0.0
    %28 = vst [vmem:[#allocation2 + $0x50] sm:$0xff] 0.0
    %29 = vst [vmem:[#allocation2 + $0x58] sm:$0xff] 0.0
    %30 = vst [vmem:[#allocation2 + $0x60] sm:$0xff] 0.0
    %31 = vst [vmem:[#allocation2 + $0x68] sm:$0xff] 0.0
    %32 = vst [vmem:[#allocation2 + $0x70] sm:$0xff] 0.0
    %33 = vst [vmem:[#allocation2 + $0x78] sm:$0xff] 0.0
    %34 = vst [vmem:[#allocation2 + $0x80] sm:$0xff] 0.0
    %35 = vst [vmem:[#allocation2 + $0x88] sm:$0xff] 0.0
    %36 = vst [vmem:[#allocation2 + $0x90] sm:$0xff] 0.0
    %37 = vst [vmem:[#allocation2 + $0x98] sm:$0xff] 0.0
    %38 = vst [vmem:[#allocation2 + $0xa0] sm:$0xff] 0.0
    %39 = vst [vmem:[#allocation2 + $0xa8] sm:$0xff] 0.0
    %40 = vst [vmem:[#allocation2 + $0xb0] sm:$0xff] 0.0
    %41 = vst [vmem:[#allocation2 + $0xb8] sm:$0xff] 0.0
    %42 = vst [vmem:[#allocation2 + $0xc0] sm:$0xff] 0.0
    %43 = vst [vmem:[#allocation2 + $0xc8] sm:$0xff] 0.0
    %44 = vst [vmem:[#allocation2 + $0xd0] sm:$0xff] 0.0
    %45 = vst [vmem:[#allocation2 + $0xd8] sm:$0xff] 0.0
    %46 = vst [vmem:[#allocation2 + $0xe0] sm:$0xff] 0.0
    %47 = vst [vmem:[#allocation2 + $0xe8] sm:$0xff] 0.0
    %48 = vst [vmem:[#allocation2 + $0xf0] sm:$0xff] 0.0
    %49 = vst [vmem:[#allocation2 + $0xf8] sm:$0xff] 0.0
    %50 = vst [vmem:[#allocation2 + $0x100] sm:$0xff] 0.0
    %51 = vst [vmem:[#allocation2 + $0x108] sm:$0xff] 0.0
    %52 = vst [vmem:[#allocation2 + $0x110] sm:$0xff] 0.0
    %53 = vst [vmem:[#allocation2 + $0x118] sm:$0xff] 0.0
    %54 = vst [vmem:[#allocation2 + $0x120] sm:$0xff] 0.0
    %55 = vst [vmem:[#allocation2 + $0x128] sm:$0xff] 0.0
    %56 = vst [vmem:[#allocation2 + $0x130] sm:$0xff] 0.0
    %57 = vst [vmem:[#allocation2 + $0x138] sm:$0xff] 0.0
    %58 = vst [vmem:[#allocation2 + $0x140] sm:$0xff] 0.0
    %59 = vst [vmem:[#allocation2 + $0x148] sm:$0xff] 0.0
    %60 = vst [vmem:[#allocation2 + $0x150] sm:$0xff] 0.0
    %61 = vst [vmem:[#allocation2 + $0x158] sm:$0xff] 0.0
    %62 = vst [vmem:[#allocation2 + $0x160] sm:$0xff] 0.0
    %63 = vst [vmem:[#allocation2 + $0x168] sm:$0xff] 0.0
    %64 = vst [vmem:[#allocation2 + $0x170] sm:$0xff] 0.0
    %65 = vst [vmem:[#allocation2 + $0x178] sm:$0xff] 0.0
    %66 = vst [vmem:[#allocation2 + $0x180] sm:$0xff] 0.0
    %67 = vst [vmem:[#allocation2 + $0x188] sm:$0xff] 0.0
    %68 = vst [vmem:[#allocation2 + $0x190] sm:$0xff] 0.0
    %69 = vst [vmem:[#allocation2 + $0x198] sm:$0xff] 0.0
    %70 = vst [vmem:[#allocation2 + $0x1a0] sm:$0xff] 0.0
    %71 = vst [vmem:[#allocation2 + $0x1a8] sm:$0xff] 0.0
    %72 = vst [vmem:[#allocation2 + $0x1b0] sm:$0xff] 0.0
    %73 = vst [vmem:[#allocation2 + $0x1b8] sm:$0xff] 0.0
    %74 = vst [vmem:[#allocation2 + $0x1c0] sm:$0xff] 0.0
    %75 = vst [vmem:[#allocation2 + $0x1c8] sm:$0xff] 0.0
    %76 = vst [vmem:[#allocation2 + $0x1d0] sm:$0xff] 0.0
    %77 = vst [vmem:[#allocation2 + $0x1d8] sm:$0xff] 0.0
    %78 = vst [vmem:[#allocation2 + $0x1e0] sm:$0xff] 0.0
    %79 = vst [vmem:[#allocation2 + $0x1e8] sm:$0xff] 0.0
    %80 = vst [vmem:[#allocation2 + $0x1f0] sm:$0xff] 0.0
    %81 = vst [vmem:[#allocation2 + $0x1f8] sm:$0xff] 0.0
  $region17: #{moves_forward.9} parent=0 // pred_fallthru
    _
  %v82 = vld [vmem:[#allocation2] sm:$0xff]
  %v83 = vld [vmem:[#allocation2 + $0x8] sm:$0xff]
  %v84 = vld [vmem:[#allocation2 + $0x10] sm:$0xff]
  %v85 = vld [vmem:[#allocation2 + $0x18] sm:$0xff]
  %v86 = vld [vmem:[#allocation2 + $0x20] sm:$0xff]
  %v87 = vld [vmem:[#allocation2 + $0x28] sm:$0xff]
  %v88 = vld [vmem:[#allocation2 + $0x30] sm:$0xff]
  %v89 = vld [vmem:[#allocation2 + $0x38] sm:$0xff]
  %v90 = vld [vmem:[#allocation2 + $0x40] sm:$0xff]
  %v91 = vld [vmem:[#allocation2 + $0x48] sm:$0xff]
  %v92 = vld [vmem:[#allocation2 + $0x50] sm:$0xff]
  %v93 = vld [vmem:[#allocation2 + $0x58] sm:$0xff]
  %v94 = vld [vmem:[#allocation2 + $0x60] sm:$0xff]
  %v95 = vld [vmem:[#allocation2 + $0x68] sm:$0xff]
  %v96 = vld [vmem:[#allocation2 + $0x70] sm:$0xff]
  %v97 = vld [vmem:[#allocation2 + $0x78] sm:$0xff]
  %v98 = vld [vmem:[#allocation2 + $0x80] sm:$0xff]
  %v99 = vld [vmem:[#allocation2 + $0x88] sm:$0xff]
  %v100 = vld [vmem:[#allocation2 + $0x90] sm:$0xff]
  %v101 = vld [vmem:[#allocation2 + $0x98] sm:$0xff]
  %v102 = vld [vmem:[#allocation2 + $0xa0] sm:$0xff]
  %v103 = vld [vmem:[#allocation2 + $0xa8] sm:$0xff]
  %v104 = vld [vmem:[#allocation2 + $0xb0] sm:$0xff]
  %v105 = vld [vmem:[#allocation2 + $0xb8] sm:$0xff]
  %v106 = vld [vmem:[#allocation2 + $0xc0] sm:$0xff]
  %v107 = vld [vmem:[#allocation2 + $0xc8] sm:$0xff]
  %v108 = vld [vmem:[#allocation2 + $0xd0] sm:$0xff]
  %v109 = vld [vmem:[#allocation2 + $0xd8] sm:$0xff]
  %v110 = vld [vmem:[#allocation2 + $0xe0] sm:$0xff]
  %v111 = vld [vmem:[#allocation2 + $0xe8] sm:$0xff]
  %v112 = vld [vmem:[#allocation2 + $0xf0] sm:$0xff]
  %v113 = vld [vmem:[#allocation2 + $0xf8] sm:$0xff]
  %v114 = vld [vmem:[#allocation2 + $0x100] sm:$0xff]
  %v115 = vld [vmem:[#allocation2 + $0x108] sm:$0xff]
  %v116 = vld [vmem:[#allocation2 + $0x110] sm:$0xff]
  %v117 = vld [vmem:[#allocation2 + $0x118] sm:$0xff]
  %v118 = vld [vmem:[#allocation2 + $0x120] sm:$0xff]
  %v119 = vld [vmem:[#allocation2 + $0x128] sm:$0xff]
  %v120 = vld [vmem:[#allocation2 + $0x130] sm:$0xff]
  %v121 = vld [vmem:[#allocation2 + $0x138] sm:$0xff]
  %v122 = vld [vmem:[#allocation2 + $0x140] sm:$0xff]
  %v123 = vld [vmem:[#allocation2 + $0x148] sm:$0xff]
  %v124 = vld [vmem:[#allocation2 + $0x150] sm:$0xff]
  %v125 = vld [vmem:[#allocation2 + $0x158] sm:$0xff]
  %v126 = vld [vmem:[#allocation2 + $0x160] sm:$0xff]
  %v127 = vld [vmem:[#allocation2 + $0x168] sm:$0xff]
  %v128 = vld [vmem:[#allocation2 + $0x170] sm:$0xff]
  %v129 = vld [vmem:[#allocation2 + $0x178] sm:$0xff]
  %v130 = vld [vmem:[#allocation2 + $0x180] sm:$0xff]
  %v131 = vld [vmem:[#allocation2 + $0x188] sm:$0xff]
  %v132 = vld [vmem:[#allocation2 + $0x190] sm:$0xff]
  %v133 = vld [vmem:[#allocation2 + $0x198] sm:$0xff]
  %v134 = vld [vmem:[#allocation2 + $0x1a0] sm:$0xff]
  %v135 = vld [vmem:[#allocation2 + $0x1a8] sm:$0xff]
  %v136 = vld [vmem:[#allocation2 + $0x1b0] sm:$0xff]
  %v137 = vld [vmem:[#allocation2 + $0x1b8] sm:$0xff]
  %v138 = vld [vmem:[#allocation2 + $0x1c0] sm:$0xff]
  %v139 = vld [vmem:[#allocation2 + $0x1c8] sm:$0xff]
  %v140 = vld [vmem:[#allocation2 + $0x1d0] sm:$0xff]
  %v141 = vld [vmem:[#allocation2 + $0x1d8] sm:$0xff]
  %v142 = vld [vmem:[#allocation2 + $0x1e0] sm:$0xff]
  %v143 = vld [vmem:[#allocation2 + $0x1e8] sm:$0xff]
  %v144 = vld [vmem:[#allocation2 + $0x1f0] sm:$0xff]
  %v145 = vld [vmem:[#allocation2 + $0x1f8] sm:$0xff]
  %v146 = vld [vmem:[%s0] sm:$0xff]
  %v147 = vld [vmem:[%s0 + $0x8] sm:$0xff]
  %v148 = vld [vmem:[%s0 + $0x10] sm:$0xff]
  %v149 = vld [vmem:[%s0 + $0x18] sm:$0xff]
  %v150 = vld [vmem:[%s0 + $0x20] sm:$0xff]
  %v151 = vld [vmem:[%s0 + $0x28] sm:$0xff]
  %v152 = vld [vmem:[%s0 + $0x30] sm:$0xff]
  %v153 = vld [vmem:[%s0 + $0x38] sm:$0xff]
  %v154 = vld [vmem:[%s0 + $0x40] sm:$0xff]
  %v155 = vld [vmem:[%s0 + $0x48] sm:$0xff]
  %v156 = vld [vmem:[%s0 + $0x50] sm:$0xff]
  %v157 = vld [vmem:[%s0 + $0x58] sm:$0xff]
  %v158 = vld [vmem:[%s0 + $0x60] sm:$0xff]
  %v159 = vld [vmem:[%s0 + $0x68] sm:$0xff]
  %v160 = vld [vmem:[%s0 + $0x70] sm:$0xff]
  %v161 = vld [vmem:[%s0 + $0x78] sm:$0xff]
  %v162 = vld [vmem:[%s0 + $0x80] sm:$0xff]
  %v163 = vld [vmem:[%s0 + $0x88] sm:$0xff]
  %v164 = vld [vmem:[%s0 + $0x90] sm:$0xff]
  %v165 = vld [vmem:[%s0 + $0x98] sm:$0xff]
  %v166 = vld [vmem:[%s0 + $0xa0] sm:$0xff]
  %v167 = vld [vmem:[%s0 + $0xa8] sm:$0xff]
  %v168 = vld [vmem:[%s0 + $0xb0] sm:$0xff]
  %v169 = vld [vmem:[%s0 + $0xb8] sm:$0xff]
  %v170 = vld [vmem:[%s0 + $0xc0] sm:$0xff]
  %v171 = vld [vmem:[%s0 + $0xc8] sm:$0xff]
  %v172 = vld [vmem:[%s0 + $0xd0] sm:$0xff]
  %v173 = vld [vmem:[%s0 + $0xd8] sm:$0xff]
  %v174 = vld [vmem:[%s0 + $0xe0] sm:$0xff]
  %v175 = vld [vmem:[%s0 + $0xe8] sm:$0xff]
  %v176 = vld [vmem:[%s0 + $0xf0] sm:$0xff]
  %v177 = vld [vmem:[%s0 + $0xf8] sm:$0xff]
  %v178 = vld [vmem:[%s0 + $0x100] sm:$0xff]
  %v179 = vld [vmem:[%s0 + $0x108] sm:$0xff]
  %v180 = vld [vmem:[%s0 + $0x110] sm:$0xff]
  %v181 = vld [vmem:[%s0 + $0x118] sm:$0xff]
  %v182 = vld [vmem:[%s0 + $0x120] sm:$0xff]
  %v183 = vld [vmem:[%s0 + $0x128] sm:$0xff]
  %v184 = vld [vmem:[%s0 + $0x130] sm:$0xff]
  %v185 = vld [vmem:[%s0 + $0x138] sm:$0xff]
  %v186 = vld [vmem:[%s0 + $0x140] sm:$0xff]
  %v187 = vld [vmem:[%s0 + $0x148] sm:$0xff]
  %v188 = vld [vmem:[%s0 + $0x150] sm:$0xff]
  %v189 = vld [vmem:[%s0 + $0x158] sm:$0xff]
  %v190 = vld [vmem:[%s0 + $0x160] sm:$0xff]
  %v191 = vld [vmem:[%s0 + $0x168] sm:$0xff]
  %v192 = vld [vmem:[%s0 + $0x170] sm:$0xff]
  %v193 = vld [vmem:[%s0 + $0x178] sm:$0xff]
  %v194 = vld [vmem:[%s0 + $0x180] sm:$0xff]
  %v195 = vld [vmem:[%s0 + $0x188] sm:$0xff]
  %v196 = vld [vmem:[%s0 + $0x190] sm:$0xff]
  %v197 = vld [vmem:[%s0 + $0x198] sm:$0xff]
  %v198 = vld [vmem:[%s0 + $0x1a0] sm:$0xff]
  %v199 = vld [vmem:[%s0 + $0x1a8] sm:$0xff]
  %v200 = vld [vmem:[%s0 + $0x1b0] sm:$0xff]
  %v201 = vld [vmem:[%s0 + $0x1b8] sm:$0xff]
  %v202 = vld [vmem:[%s0 + $0x1c0] sm:$0xff]
  %v203 = vld [vmem:[%s0 + $0x1c8] sm:$0xff]
  %v204 = vld [vmem:[%s0 + $0x1d0] sm:$0xff]
  %v205 = vld [vmem:[%s0 + $0x1d8] sm:$0xff]
  %v206 = vld [vmem:[%s0 + $0x1e0] sm:$0xff]
  %v207 = vld [vmem:[%s0 + $0x1e8] sm:$0xff]
  %v208 = vld [vmem:[%s0 + $0x1f0] sm:$0xff]
  %v209 = vld [vmem:[%s0 + $0x1f8] sm:$0xff]
  %v210 = vld [vmem:[%s1] sm:$0xff]
  %v211 = vld [vmem:[%s1 + $0x8] sm:$0xff]
  %v212 = vld [vmem:[%s1 + $0x10] sm:$0xff]
  %v213 = vld [vmem:[%s1 + $0x18] sm:$0xff]
  %v214 = vld [vmem:[%s1 + $0x20] sm:$0xff]
  %v215 = vld [vmem:[%s1 + $0x28] sm:$0xff]
  %v216 = vld [vmem:[%s1 + $0x30] sm:$0xff]
  %v217 = vld [vmem:[%s1 + $0x38] sm:$0xff]
  %v218 = vld [vmem:[%s1 + $0x40] sm:$0xff]
  %v219 = vld [vmem:[%s1 + $0x48] sm:$0xff]
  %v220 = vld [vmem:[%s1 + $0x50] sm:$0xff]
  %v221 = vld [vmem:[%s1 + $0x58] sm:$0xff]
  %v222 = vld [vmem:[%s1 + $0x60] sm:$0xff]
  %v223 = vld [vmem:[%s1 + $0x68] sm:$0xff]
  %v224 = vld [vmem:[%s1 + $0x70] sm:$0xff]
  %v225 = vld [vmem:[%s1 + $0x78] sm:$0xff]
  %226 = vmatprep.subr.mxu0 0.0
  %227 = vmatpush1.msra.mxu0 %v225
  %228 = vmatprep.subr.mxu0 0.0
  %229 = vmatpush1.msra.mxu0 %v224
  %230 = vmatprep.subr.mxu0 0.0
  %231 = vmatpush1.msra.mxu0 %v223
  %232 = vmatprep.subr.mxu0 0.0
  %233 = vmatpush1.msra.mxu0 %v222
  %234 = vmatprep.subr.mxu0 0.0
  %235 = vmatpush1.msra.mxu0 %v221
  %236 = vmatprep.subr.mxu0 0.0
  %237 = vmatpush1.msra.mxu0 %v220
  %238 = vmatprep.subr.mxu0 0.0
  %239 = vmatpush1.msra.mxu0 %v219
  %240 = vmatprep.subr.mxu0 0.0
  %241 = vmatpush1.msra.mxu0 %v218
  %242 = vmatprep.subr.mxu0 0.0
  %243 = vmatpush1.msra.mxu0 %v217
  %244 = vmatprep.subr.mxu0 0.0
  %245 = vmatpush1.msra.mxu0 %v216
  %246 = vmatprep.subr.mxu0 0.0
  %247 = vmatpush1.msra.mxu0 %v215
  %248 = vmatprep.subr.mxu0 0.0
  %249 = vmatpush1.msra.mxu0 %v214
  %250 = vmatprep.subr.mxu0 0.0
  %251 = vmatpush1.msra.mxu0 %v213
  %252 = vmatprep.subr.mxu0 0.0
  %253 = vmatpush1.msra.mxu0 %v212
  %254 = vmatprep.subr.mxu0 0.0
  %255 = vmatpush1.msra.mxu0 %v211
  %256 = vmatprep.subr.mxu0 0.0
  %257 = vmatpush1.msra.mxu0 %v210
  %258 = vmatprep.subr.mxu0 0.0
  %259 = vmatpush2.msra.mxu0 0.0
  %260 = vmatprep.subr.mxu0 0.0
  %261 = vmatpush2.msra.mxu0 0.0
  %262 = vmatprep.subr.mxu0 0.0
  %263 = vmatpush2.msra.mxu0 0.0
  %264 = vmatprep.subr.mxu0 0.0
  %265 = vmatpush2.msra.mxu0 0.0
  %266 = vmatprep.subr.mxu0 0.0
  %267 = vmatpush2.msra.mxu0 0.0
  %268 = vmatprep.subr.mxu0 0.0
  %269 = vmatpush2.msra.mxu0 0.0
  %270 = vmatprep.subr.mxu0 0.0
  %271 = vmatpush2.msra.mxu0 0.0
  %272 = vmatprep.subr.mxu0 0.0
  %273 = vmatpush2.msra.mxu0 0.0
  %274 = vmatprep.subr.mxu0 0.0
  %275 = vmatpush2.msra.mxu0 0.0
  %276 = vmatprep.subr.mxu0 0.0
  %277 = vmatpush2.msra.mxu0 0.0
  %278 = vmatprep.subr.mxu0 0.0
  %279 = vmatpush2.msra.mxu0 0.0
  %280 = vmatprep.subr.mxu0 0.0
  %281 = vmatpush2.msra.mxu0 0.0
  %282 = vmatprep.subr.mxu0 0.0
  %283 = vmatpush2.msra.mxu0 0.0
  %284 = vmatprep.subr.mxu0 0.0
  %285 = vmatpush2.msra.mxu0 0.0
  %286 = vmatprep.subr.mxu0 0.0
  %287 = vmatpush2.msra.mxu0 0.0
  %288 = vmatprep.subr.mxu0 0.0
  %289 = vmatpush2.msra.mxu0 0.0
  %290 = vmatprep.mubr.f32.mxu0 0.0
  %291 = vmatmul.mubr.f32.gmra.mxu0 %v146
  %v292 = vpop.f32.mrf.mxu0
  %v293 = vadd.f32 0.0, %v292
  %v294 = vpop.f32.mrf.mxu0
  %295 = vmatprep.mubr.f32.mxu0 0.0
  %296 = vmatmul.mubr.f32.gmra.mxu0 %v147
  %v297 = vpop.f32.mrf.mxu0
  %v298 = vadd.f32 0.0, %v297
  %v299 = vpop.f32.mrf.mxu0
  %300 = vmatprep.mubr.f32.mxu0 0.0
  %301 = vmatmul.mubr.f32.gmra.mxu0 %v148
  %v302 = vpop.f32.mrf.mxu0
  %v303 = vadd.f32 0.0, %v302
  %v304 = vpop.f32.mrf.mxu0
  %305 = vmatprep.mubr.f32.mxu0 0.0
  %306 = vmatmul.mubr.f32.gmra.mxu0 %v149
  %v307 = vpop.f32.mrf.mxu0
  %v308 = vadd.f32 0.0, %v307
  %v309 = vpop.f32.mrf.mxu0
  %310 = vmatprep.mubr.f32.mxu0 0.0
  %311 = vmatmul.mubr.f32.gmra.mxu0 %v150
  %v312 = vpop.f32.mrf.mxu0
  %v313 = vadd.f32 0.0, %v312
  %v314 = vpop.f32.mrf.mxu0
  %315 = vmatprep.mubr.f32.mxu0 0.0
  %316 = vmatmul.mubr.f32.gmra.mxu0 %v151
  %v317 = vpop.f32.mrf.mxu0
  %v318 = vadd.f32 0.0, %v317
  %v319 = vpop.f32.mrf.mxu0
  %320 = vmatprep.mubr.f32.mxu0 0.0
  %321 = vmatmul.mubr.f32.gmra.mxu0 %v152
  %v322 = vpop.f32.mrf.mxu0
  %v323 = vadd.f32 0.0, %v322
  %v324 = vpop.f32.mrf.mxu0
  %325 = vmatprep.mubr.f32.mxu0 0.0
  %326 = vmatmul.mubr.f32.gmra.mxu0 %v153
  %v327 = vpop.f32.mrf.mxu0
  %v328 = vadd.f32 0.0, %v327
  %v329 = vpop.f32.mrf.mxu0
  %330 = vmatprep.mubr.f32.mxu0 0.0
  %331 = vmatmul.mubr.f32.gmra.mxu0 %v154
  %v332 = vpop.f32.mrf.mxu0
  %v333 = vadd.f32 0.0, %v332
  %v334 = vpop.f32.mrf.mxu0
  %335 = vmatprep.mubr.f32.mxu0 0.0
  %336 = vmatmul.mubr.f32.gmra.mxu0 %v155
  %v337 = vpop.f32.mrf.mxu0
  %v338 = vadd.f32 0.0, %v337
  %v339 = vpop.f32.mrf.mxu0
  %340 = vmatprep.mubr.f32.mxu0 0.0
  %341 = vmatmul.mubr.f32.gmra.mxu0 %v156
  %v342 = vpop.f32.mrf.mxu0
  %v343 = vadd.f32 0.0, %v342
  %v344 = vpop.f32.mrf.mxu0
  %345 = vmatprep.mubr.f32.mxu0 0.0
  %346 = vmatmul.mubr.f32.gmra.mxu0 %v157
  %v347 = vpop.f32.mrf.mxu0
  %v348 = vadd.f32 0.0, %v347
  %v349 = vpop.f32.mrf.mxu0
  %350 = vmatprep.mubr.f32.mxu0 0.0
  %351 = vmatmul.mubr.f32.gmra.mxu0 %v158
  %v352 = vpop.f32.mrf.mxu0
  %v353 = vadd.f32 0.0, %v352
  %v354 = vpop.f32.mrf.mxu0
  %355 = vmatprep.mubr.f32.mxu0 0.0
  %356 = vmatmul.mubr.f32.gmra.mxu0 %v159
  %v357 = vpop.f32.mrf.mxu0
  %v358 = vadd.f32 0.0, %v357
  %v359 = vpop.f32.mrf.mxu0
  %360 = vmatprep.mubr.f32.mxu0 0.0
  %361 = vmatmul.mubr.f32.gmra.mxu0 %v160
  %v362 = vpop.f32.mrf.mxu0
  %v363 = vadd.f32 0.0, %v362
  %v364 = vpop.f32.mrf.mxu0
  %365 = vmatprep.mubr.f32.mxu0 0.0
  %366 = vmatmul.mubr.f32.gmra.mxu0 %v161
  %v367 = vpop.f32.mrf.mxu0
  %v368 = vadd.f32 0.0, %v367
  %v369 = vpop.f32.mrf.mxu0
  %370 = vmatprep.mubr.f32.mxu0 0.0
  %371 = vmatmul.mubr.f32.gmra.mxu0 %v162
  %v372 = vpop.f32.mrf.mxu0
  %v373 = vadd.f32 0.0, %v372
  %v374 = vpop.f32.mrf.mxu0
  %375 = vmatprep.mubr.f32.mxu0 0.0
  %376 = vmatmul.mubr.f32.gmra.mxu0 %v163
  %v377 = vpop.f32.mrf.mxu0
  %v378 = vadd.f32 0.0, %v377
  %v379 = vpop.f32.mrf.mxu0
  %380 = vmatprep.mubr.f32.mxu0 0.0
  %381 = vmatmul.mubr.f32.gmra.mxu0 %v164
  %v382 = vpop.f32.mrf.mxu0
  %v383 = vadd.f32 0.0, %v382
  %v384 = vpop.f32.mrf.mxu0
  %385 = vmatprep.mubr.f32.mxu0 0.0
  %386 = vmatmul.mubr.f32.gmra.mxu0 %v165
  %v387 = vpop.f32.mrf.mxu0
  %v388 = vadd.f32 0.0, %v387
  %v389 = vpop.f32.mrf.mxu0
  %390 = vmatprep.mubr.f32.mxu0 0.0
  %391 = vmatmul.mubr.f32.gmra.mxu0 %v166
  %v392 = vpop.f32.mrf.mxu0
  %v393 = vadd.f32 0.0, %v392
  %v394 = vpop.f32.mrf.mxu0
  %395 = vmatprep.mubr.f32.mxu0 0.0
  %396 = vmatmul.mubr.f32.gmra.mxu0 %v167
  %v397 = vpop.f32.mrf.mxu0
  %v398 = vadd.f32 0.0, %v397
  %v399 = vpop.f32.mrf.mxu0
  %400 = vmatprep.mubr.f32.mxu0 0.0
  %401 = vmatmul.mubr.f32.gmra.mxu0 %v168
  %v402 = vpop.f32.mrf.mxu0
  %v403 = vadd.f32 0.0, %v402
  %v404 = vpop.f32.mrf.mxu0
  %405 = vmatprep.mubr.f32.mxu0 0.0
  %406 = vmatmul.mubr.f32.gmra.mxu0 %v169
  %v407 = vpop.f32.mrf.mxu0
  %v408 = vadd.f32 0.0, %v407
  %v409 = vpop.f32.mrf.mxu0
  %410 = vmatprep.mubr.f32.mxu0 0.0
  %411 = vmatmul.mubr.f32.gmra.mxu0 %v170
  %v412 = vpop.f32.mrf.mxu0
  %v413 = vadd.f32 0.0, %v412
  %v414 = vpop.f32.mrf.mxu0
  %415 = vmatprep.mubr.f32.mxu0 0.0
  %416 = vmatmul.mubr.f32.gmra.mxu0 %v171
  %v417 = vpop.f32.mrf.mxu0
  %v418 = vadd.f32 0.0, %v417
  %v419 = vpop.f32.mrf.mxu0
  %420 = vmatprep.mubr.f32.mxu0 0.0
  %421 = vmatmul.mubr.f32.gmra.mxu0 %v172
  %v422 = vpop.f32.mrf.mxu0
  %v423 = vadd.f32 0.0, %v422
  %v424 = vpop.f32.mrf.mxu0
  %425 = vmatprep.mubr.f32.mxu0 0.0
  %426 = vmatmul.mubr.f32.gmra.mxu0 %v173
  %v427 = vpop.f32.mrf.mxu0
  %v428 = vadd.f32 0.0, %v427
  %v429 = vpop.f32.mrf.mxu0
  %430 = vmatprep.mubr.f32.mxu0 0.0
  %431 = vmatmul.mubr.f32.gmra.mxu0 %v174
  %v432 = vpop.f32.mrf.mxu0
  %v433 = vadd.f32 0.0, %v432
  %v434 = vpop.f32.mrf.mxu0
  %435 = vmatprep.mubr.f32.mxu0 0.0
  %436 = vmatmul.mubr.f32.gmra.mxu0 %v175
  %v437 = vpop.f32.mrf.mxu0
  %v438 = vadd.f32 0.0, %v437
  %v439 = vpop.f32.mrf.mxu0
  %440 = vmatprep.mubr.f32.mxu0 0.0
  %441 = vmatmul.mubr.f32.gmra.mxu0 %v176
  %v442 = vpop.f32.mrf.mxu0
  %v443 = vadd.f32 0.0, %v442
  %v444 = vpop.f32.mrf.mxu0
  %445 = vmatprep.mubr.f32.mxu0 0.0
  %446 = vmatmul.mubr.f32.gmra.mxu0 %v177
  %v447 = vpop.f32.mrf.mxu0
  %v448 = vadd.f32 0.0, %v447
  %v449 = vpop.f32.mrf.mxu0
  %450 = vmatprep.mubr.f32.mxu0 0.0
  %451 = vmatmul.mubr.f32.gmra.mxu0 %v178
  %v452 = vpop.f32.mrf.mxu0
  %v453 = vadd.f32 0.0, %v452
  %v454 = vpop.f32.mrf.mxu0
  %455 = vmatprep.mubr.f32.mxu0 0.0
  %456 = vmatmul.mubr.f32.gmra.mxu0 %v179
  %v457 = vpop.f32.mrf.mxu0
  %v458 = vadd.f32 0.0, %v457
  %v459 = vpop.f32.mrf.mxu0
  %460 = vmatprep.mubr.f32.mxu0 0.0
  %461 = vmatmul.mubr.f32.gmra.mxu0 %v180
  %v462 = vpop.f32.mrf.mxu0
  %v463 = vadd.f32 0.0, %v462
  %v464 = vpop.f32.mrf.mxu0
  %465 = vmatprep.mubr.f32.mxu0 0.0
  %466 = vmatmul.mubr.f32.gmra.mxu0 %v181
  %v467 = vpop.f32.mrf.mxu0
  %v468 = vadd.f32 0.0, %v467
  %v469 = vpop.f32.mrf.mxu0
  %470 = vmatprep.mubr.f32.mxu0 0.0
  %471 = vmatmul.mubr.f32.gmra.mxu0 %v182
  %v472 = vpop.f32.mrf.mxu0
  %v473 = vadd.f32 0.0, %v472
  %v474 = vpop.f32.mrf.mxu0
  %475 = vmatprep.mubr.f32.mxu0 0.0
  %476 = vmatmul.mubr.f32.gmra.mxu0 %v183
  %v477 = vpop.f32.mrf.mxu0
  %v478 = vadd.f32 0.0, %v477
  %v479 = vpop.f32.mrf.mxu0
  %480 = vmatprep.mubr.f32.mxu0 0.0
  %481 = vmatmul.mubr.f32.gmra.mxu0 %v184
  %v482 = vpop.f32.mrf.mxu0
  %v483 = vadd.f32 0.0, %v482
  %v484 = vpop.f32.mrf.mxu0
  %485 = vmatprep.mubr.f32.mxu0 0.0
  %486 = vmatmul.mubr.f32.gmra.mxu0 %v185
  %v487 = vpop.f32.mrf.mxu0
  %v488 = vadd.f32 0.0, %v487
  %v489 = vpop.f32.mrf.mxu0
  %490 = vmatprep.mubr.f32.mxu0 0.0
  %491 = vmatmul.mubr.f32.gmra.mxu0 %v186
  %v492 = vpop.f32.mrf.mxu0
  %v493 = vadd.f32 0.0, %v492
  %v494 = vpop.f32.mrf.mxu0
  %495 = vmatprep.mubr.f32.mxu0 0.0
  %496 = vmatmul.mubr.f32.gmra.mxu0 %v187
  %v497 = vpop.f32.mrf.mxu0
  %v498 = vadd.f32 0.0, %v497
  %v499 = vpop.f32.mrf.mxu0
  %500 = vmatprep.mubr.f32.mxu0 0.0
  %501 = vmatmul.mubr.f32.gmra.mxu0 %v188
  %v502 = vpop.f32.mrf.mxu0
  %v503 = vadd.f32 0.0, %v502
  %v504 = vpop.f32.mrf.mxu0
  %505 = vmatprep.mubr.f32.mxu0 0.0
  %506 = vmatmul.mubr.f32.gmra.mxu0 %v189
  %v507 = vpop.f32.mrf.mxu0
  %v508 = vadd.f32 0.0, %v507
  %v509 = vpop.f32.mrf.mxu0
  %510 = vmatprep.mubr.f32.mxu0 0.0
  %511 = vmatmul.mubr.f32.gmra.mxu0 %v190
  %v512 = vpop.f32.mrf.mxu0
  %v513 = vadd.f32 0.0, %v512
  %v514 = vpop.f32.mrf.mxu0
  %515 = vmatprep.mubr.f32.mxu0 0.0
  %516 = vmatmul.mubr.f32.gmra.mxu0 %v191
  %v517 = vpop.f32.mrf.mxu0
  %v518 = vadd.f32 0.0, %v517
  %v519 = vpop.f32.mrf.mxu0
  %520 = vmatprep.mubr.f32.mxu0 0.0
  %521 = vmatmul.mubr.f32.gmra.mxu0 %v192
  %v522 = vpop.f32.mrf.mxu0
  %v523 = vadd.f32 0.0, %v522
  %v524 = vpop.f32.mrf.mxu0
  %525 = vmatprep.mubr.f32.mxu0 0.0
  %526 = vmatmul.mubr.f32.gmra.mxu0 %v193
  %v527 = vpop.f32.mrf.mxu0
  %v528 = vadd.f32 0.0, %v527
  %v529 = vpop.f32.mrf.mxu0
  %530 = vmatprep.mubr.f32.mxu0 0.0
  %531 = vmatmul.mubr.f32.gmra.mxu0 %v194
  %v532 = vpop.f32.mrf.mxu0
  %v533 = vadd.f32 0.0, %v532
  %v534 = vpop.f32.mrf.mxu0
  %535 = vmatprep.mubr.f32.mxu0 0.0
  %536 = vmatmul.mubr.f32.gmra.mxu0 %v195
  %v537 = vpop.f32.mrf.mxu0
  %v538 = vadd.f32 0.0, %v537
  %v539 = vpop.f32.mrf.mxu0
  %540 = vmatprep.mubr.f32.mxu0 0.0
  %541 = vmatmul.mubr.f32.gmra.mxu0 %v196
  %v542 = vpop.f32.mrf.mxu0
  %v543 = vadd.f32 0.0, %v542
  %v544 = vpop.f32.mrf.mxu0
  %545 = vmatprep.mubr.f32.mxu0 0.0
  %546 = vmatmul.mubr.f32.gmra.mxu0 %v197
  %v547 = vpop.f32.mrf.mxu0
  %v548 = vadd.f32 0.0, %v547
  %v549 = vpop.f32.mrf.mxu0
  %550 = vmatprep.mubr.f32.mxu0 0.0
  %551 = vmatmul.mubr.f32.gmra.mxu0 %v198
  %v552 = vpop.f32.mrf.mxu0
  %v553 = vadd.f32 0.0, %v552
  %v554 = vpop.f32.mrf.mxu0
  %555 = vmatprep.mubr.f32.mxu0 0.0
  %556 = vmatmul.mubr.f32.gmra.mxu0 %v199
  %v557 = vpop.f32.mrf.mxu0
  %v558 = vadd.f32 0.0, %v557
  %v559 = vpop.f32.mrf.mxu0
  %560 = vmatprep.mubr.f32.mxu0 0.0
  %561 = vmatmul.mubr.f32.gmra.mxu0 %v200
  %v562 = vpop.f32.mrf.mxu0
  %v563 = vadd.f32 0.0, %v562
  %v564 = vpop.f32.mrf.mxu0
  %565 = vmatprep.mubr.f32.mxu0 0.0
  %566 = vmatmul.mubr.f32.gmra.mxu0 %v201
  %v567 = vpop.f32.mrf.mxu0
  %v568 = vadd.f32 0.0, %v567
  %v569 = vpop.f32.mrf.mxu0
  %570 = vmatprep.mubr.f32.mxu0 0.0
  %571 = vmatmul.mubr.f32.gmra.mxu0 %v202
  %v572 = vpop.f32.mrf.mxu0
  %v573 = vadd.f32 0.0, %v572
  %v574 = vpop.f32.mrf.mxu0
  %575 = vmatprep.mubr.f32.mxu0 0.0
  %576 = vmatmul.mubr.f32.gmra.mxu0 %v203
  %v577 = vpop.f32.mrf.mxu0
  %v578 = vadd.f32 0.0, %v577
  %v579 = vpop.f32.mrf.mxu0
  %580 = vmatprep.mubr.f32.mxu0 0.0
  %581 = vmatmul.mubr.f32.gmra.mxu0 %v204
  %v582 = vpop.f32.mrf.mxu0
  %v583 = vadd.f32 0.0, %v582
  %v584 = vpop.f32.mrf.mxu0
  %585 = vmatprep.mubr.f32.mxu0 0.0
  %586 = vmatmul.mubr.f32.gmra.mxu0 %v205
  %v587 = vpop.f32.mrf.mxu0
  %v588 = vadd.f32 0.0, %v587
  %v589 = vpop.f32.mrf.mxu0
  %590 = vmatprep.mubr.f32.mxu0 0.0
  %591 = vmatmul.mubr.f32.gmra.mxu0 %v206
  %v592 = vpop.f32.mrf.mxu0
  %v593 = vadd.f32 0.0, %v592
  %v594 = vpop.f32.mrf.mxu0
  %595 = vmatprep.mubr.f32.mxu0 0.0
  %596 = vmatmul.mubr.f32.gmra.mxu0 %v207
  %v597 = vpop.f32.mrf.mxu0
  %v598 = vadd.f32 0.0, %v597
  %v599 = vpop.f32.mrf.mxu0
  %600 = vmatprep.mubr.f32.mxu0 0.0
  %601 = vmatmul.mubr.f32.gmra.mxu0 %v208
  %v602 = vpop.f32.mrf.mxu0
  %v603 = vadd.f32 0.0, %v602
  %v604 = vpop.f32.mrf.mxu0
  %605 = vmatprep.mubr.f32.mxu0 0.0
  %606 = vmatmul.mubr.f32.gmra.mxu0 %v209
  %v607 = vpop.f32.mrf.mxu0
  %v608 = vadd.f32 0.0, %v607
  %v609 = vpop.f32.mrf.mxu0
  %610 = vdwg.mxu0
  %v611 = vadd.f32 %v82, %v293
  %v612 = vadd.f32 %v83, %v298
  %v613 = vadd.f32 %v84, %v303
  %v614 = vadd.f32 %v85, %v308
  %v615 = vadd.f32 %v86, %v313
  %v616 = vadd.f32 %v87, %v318
  %v617 = vadd.f32 %v88, %v323
  %v618 = vadd.f32 %v89, %v328
  %v619 = vadd.f32 %v90, %v333
  %v620 = vadd.f32 %v91, %v338
  %v621 = vadd.f32 %v92, %v343
  %v622 = vadd.f32 %v93, %v348
  %v623 = vadd.f32 %v94, %v353
  %v624 = vadd.f32 %v95, %v358
  %v625 = vadd.f32 %v96, %v363
  %v626 = vadd.f32 %v97, %v368
  %v627 = vadd.f32 %v98, %v373
  %v628 = vadd.f32 %v99, %v378
  %v629 = vadd.f32 %v100, %v383
  %v630 = vadd.f32 %v101, %v388
  %v631 = vadd.f32 %v102, %v393
  %v632 = vadd.f32 %v103, %v398
  %v633 = vadd.f32 %v104, %v403
  %v634 = vadd.f32 %v105, %v408
  %v635 = vadd.f32 %v106, %v413
  %v636 = vadd.f32 %v107, %v418
  %v637 = vadd.f32 %v108, %v423
  %v638 = vadd.f32 %v109, %v428
  %v639 = vadd.f32 %v110, %v433
  %v640 = vadd.f32 %v111, %v438
  %v641 = vadd.f32 %v112, %v443
  %v642 = vadd.f32 %v113, %v448
  %v643 = vadd.f32 %v114, %v453
  %v644 = vadd.f32 %v115, %v458
  %v645 = vadd.f32 %v116, %v463
  %v646 = vadd.f32 %v117, %v468
  %v647 = vadd.f32 %v118, %v473
  %v648 = vadd.f32 %v119, %v478
  %v649 = vadd.f32 %v120, %v483
  %v650 = vadd.f32 %v121, %v488
  %v651 = vadd.f32 %v122, %v493
  %v652 = vadd.f32 %v123, %v498
  %v653 = vadd.f32 %v124, %v503
  %v654 = vadd.f32 %v125, %v508
  %v655 = vadd.f32 %v126, %v513
  %v656 = vadd.f32 %v127, %v518
  %v657 = vadd.f32 %v128, %v523
  %v658 = vadd.f32 %v129, %v528
  %v659 = vadd.f32 %v130, %v533
  %v660 = vadd.f32 %v131, %v538
  %v661 = vadd.f32 %v132, %v543
  %v662 = vadd.f32 %v133, %v548
  %v663 = vadd.f32 %v134, %v553
  %v664 = vadd.f32 %v135, %v558
  %v665 = vadd.f32 %v136, %v563
  %v666 = vadd.f32 %v137, %v568
  %v667 = vadd.f32 %v138, %v573
  %v668 = vadd.f32 %v139, %v578
  %v669 = vadd.f32 %v140, %v583
  %v670 = vadd.f32 %v141, %v588
  %v671 = vadd.f32 %v142, %v593
  %v672 = vadd.f32 %v143, %v598
  %v673 = vadd.f32 %v144, %v603
  %v674 = vadd.f32 %v145, %v608
  %675 = vst [vmem:[#allocation2] sm:$0xff] %v611
  %676 = vst [vmem:[#allocation2 + $0x8] sm:$0xff] %v612
  %677 = vst [vmem:[#allocation2 + $0x10] sm:$0xff] %v613
  %678 = vst [vmem:[#allocation2 + $0x18] sm:$0xff] %v614
  %679 = vst [vmem:[#allocation2 + $0x20] sm:$0xff] %v615
  %680 = vst [vmem:[#allocation2 + $0x28] sm:$0xff] %v616
  %681 = vst [vmem:[#allocation2 + $0x30] sm:$0xff] %v617
  %682 = vst [vmem:[#allocation2 + $0x38] sm:$0xff] %v618
  %683 = vst [vmem:[#allocation2 + $0x40] sm:$0xff] %v619
  %684 = vst [vmem:[#allocation2 + $0x48] sm:$0xff] %v620
  %685 = vst [vmem:[#allocation2 + $0x50] sm:$0xff] %v621
  %686 = vst [vmem:[#allocation2 + $0x58] sm:$0xff] %v622
  %687 = vst [vmem:[#allocation2 + $0x60] sm:$0xff] %v623
  %688 = vst [vmem:[#allocation2 + $0x68] sm:$0xff] %v624
  %689 = vst [vmem:[#allocation2 + $0x70] sm:$0xff] %v625
  %690 = vst [vmem:[#allocation2 + $0x78] sm:$0xff] %v626
  %691 = vst [vmem:[#allocation2 + $0x80] sm:$0xff] %v627
  %692 = vst [vmem:[#allocation2 + $0x88] sm:$0xff] %v628
  %693 = vst [vmem:[#allocation2 + $0x90] sm:$0xff] %v629
  %694 = vst [vmem:[#allocation2 + $0x98] sm:$0xff] %v630
  %695 = vst [vmem:[#allocation2 + $0xa0] sm:$0xff] %v631
  %696 = vst [vmem:[#allocation2 + $0xa8] sm:$0xff] %v632
  %697 = vst [vmem:[#allocation2 + $0xb0] sm:$0xff] %v633
  %698 = vst [vmem:[#allocation2 + $0xb8] sm:$0xff] %v634
  %699 = vst [vmem:[#allocation2 + $0xc0] sm:$0xff] %v635
  %700 = vst [vmem:[#allocation2 + $0xc8] sm:$0xff] %v636
  %701 = vst [vmem:[#allocation2 + $0xd0] sm:$0xff] %v637
  %702 = vst [vmem:[#allocation2 + $0xd8] sm:$0xff] %v638
  %703 = vst [vmem:[#allocation2 + $0xe0] sm:$0xff] %v639
  %704 = vst [vmem:[#allocation2 + $0xe8] sm:$0xff] %v640
  %705 = vst [vmem:[#allocation2 + $0xf0] sm:$0xff] %v641
  %706 = vst [vmem:[#allocation2 + $0xf8] sm:$0xff] %v642
  %707 = vst [vmem:[#allocation2 + $0x100] sm:$0xff] %v643
  %708 = vst [vmem:[#allocation2 + $0x108] sm:$0xff] %v644
  %709 = vst [vmem:[#allocation2 + $0x110] sm:$0xff] %v645
  %710 = vst [vmem:[#allocation2 + $0x118] sm:$0xff] %v646
  %711 = vst [vmem:[#allocation2 + $0x120] sm:$0xff] %v647
  %712 = vst [vmem:[#allocation2 + $0x128] sm:$0xff] %v648
  %713 = vst [vmem:[#allocation2 + $0x130] sm:$0xff] %v649
  %714 = vst [vmem:[#allocation2 + $0x138] sm:$0xff] %v650
  %715 = vst [vmem:[#allocation2 + $0x140] sm:$0xff] %v651
  %716 = vst [vmem:[#allocation2 + $0x148] sm:$0xff] %v652
  %717 = vst [vmem:[#allocation2 + $0x150] sm:$0xff] %v653
  %718 = vst [vmem:[#allocation2 + $0x158] sm:$0xff] %v654
  %719 = vst [vmem:[#allocation2 + $0x160] sm:$0xff] %v655
  %720 = vst [vmem:[#allocation2 + $0x168] sm:$0xff] %v656
  %721 = vst [vmem:[#allocation2 + $0x170] sm:$0xff] %v657
  %722 = vst [vmem:[#allocation2 + $0x178] sm:$0xff] %v658
  %723 = vst [vmem:[#allocation2 + $0x180] sm:$0xff] %v659
  %724 = vst [vmem:[#allocation2 + $0x188] sm:$0xff] %v660
  %725 = vst [vmem:[#allocation2 + $0x190] sm:$0xff] %v661
  %726 = vst [vmem:[#allocation2 + $0x198] sm:$0xff] %v662
  %727 = vst [vmem:[#allocation2 + $0x1a0] sm:$0xff] %v663
  %728 = vst [vmem:[#allocation2 + $0x1a8] sm:$0xff] %v664
  %729 = vst [vmem:[#allocation2 + $0x1b0] sm:$0xff] %v665
  %730 = vst [vmem:[#allocation2 + $0x1b8] sm:$0xff] %v666
  %731 = vst [vmem:[#allocation2 + $0x1c0] sm:$0xff] %v667
  %732 = vst [vmem:[#allocation2 + $0x1c8] sm:$0xff] %v668
  %733 = vst [vmem:[#allocation2 + $0x1d0] sm:$0xff] %v669
  %734 = vst [vmem:[#allocation2 + $0x1d8] sm:$0xff] %v670
  %735 = vst [vmem:[#allocation2 + $0x1e0] sm:$0xff] %v671
  %736 = vst [vmem:[#allocation2 + $0x1e8] sm:$0xff] %v672
  %737 = vst [vmem:[#allocation2 + $0x1f0] sm:$0xff] %v673
  %738 = vst [vmem:[#allocation2 + $0x1f8] sm:$0xff] %v674
  // Predicated region
  $region18: #{moves_forward.9} parent=0 // pred_check
    %p739 = pneg %p14
  $region19: #{moves_forward.9} parent=0 // pred_check_branch
    %741 = sbr.rel (%p739) target = $region21
  $region20: #{moves_forward.9} parent=0 // pred_region
    %v742 = vld [vmem:[#allocation2] sm:$0xff]
    %v743 = vld [vmem:[#allocation2 + $0x8] sm:$0xff]
    %v744 = vld [vmem:[#allocation2 + $0x10] sm:$0xff]
    %v745 = vld [vmem:[#allocation2 + $0x18] sm:$0xff]
    %v746 = vld [vmem:[#allocation2 + $0x20] sm:$0xff]
    %v747 = vld [vmem:[#allocation2 + $0x28] sm:$0xff]
    %v748 = vld [vmem:[#allocation2 + $0x30] sm:$0xff]
    %v749 = vld [vmem:[#allocation2 + $0x38] sm:$0xff]
    %v750 = vld [vmem:[#allocation2 + $0x40] sm:$0xff]
    %v751 = vld [vmem:[#allocation2 + $0x48] sm:$0xff]
    %v752 = vld [vmem:[#allocation2 + $0x50] sm:$0xff]
    %v753 = vld [vmem:[#allocation2 + $0x58] sm:$0xff]
    %v754 = vld [vmem:[#allocation2 + $0x60] sm:$0xff]
    %v755 = vld [vmem:[#allocation2 + $0x68] sm:$0xff]
    %v756 = vld [vmem:[#allocation2 + $0x70] sm:$0xff]
    %v757 = vld [vmem:[#allocation2 + $0x78] sm:$0xff]
    %v758 = vld [vmem:[#allocation2 + $0x80] sm:$0xff]
    %v759 = vld [vmem:[#allocation2 + $0x88] sm:$0xff]
    %v760 = vld [vmem:[#allocation2 + $0x90] sm:$0xff]
    %v761 = vld [vmem:[#allocation2 + $0x98] sm:$0xff]
    %v762 = vld [vmem:[#allocation2 + $0xa0] sm:$0xff]
    %v763 = vld [vmem:[#allocation2 + $0xa8] sm:$0xff]
    %v764 = vld [vmem:[#allocation2 + $0xb0] sm:$0xff]
    %v765 = vld [vmem:[#allocation2 + $0xb8] sm:$0xff]
    %v766 = vld [vmem:[#allocation2 + $0xc0] sm:$0xff]
    %v767 = vld [vmem:[#allocation2 + $0xc8] sm:$0xff]
    %v768 = vld [vmem:[#allocation2 + $0xd0] sm:$0xff]
    %v769 = vld [vmem:[#allocation2 + $0xd8] sm:$0xff]
    %v770 = vld [vmem:[#allocation2 + $0xe0] sm:$0xff]
    %v771 = vld [vmem:[#allocation2 + $0xe8] sm:$0xff]
    %v772 = vld [vmem:[#allocation2 + $0xf0] sm:$0xff]
    %v773 = vld [vmem:[#allocation2 + $0xf8] sm:$0xff]
    %v774 = vld [vmem:[#allocation2 + $0x100] sm:$0xff]
    %v775 = vld [vmem:[#allocation2 + $0x108] sm:$0xff]
    %v776 = vld [vmem:[#allocation2 + $0x110] sm:$0xff]
    %v777 = vld [vmem:[#allocation2 + $0x118] sm:$0xff]
    %v778 = vld [vmem:[#allocation2 + $0x120] sm:$0xff]
    %v779 = vld [vmem:[#allocation2 + $0x128] sm:$0xff]
    %v780 = vld [vmem:[#allocation2 + $0x130] sm:$0xff]
    %v781 = vld [vmem:[#allocation2 + $0x138] sm:$0xff]
    %v782 = vld [vmem:[#allocation2 + $0x140] sm:$0xff]
    %v783 = vld [vmem:[#allocation2 + $0x148] sm:$0xff]
    %v784 = vld [vmem:[#allocation2 + $0x150] sm:$0xff]
    %v785 = vld [vmem:[#allocation2 + $0x158] sm:$0xff]
    %v786 = vld [vmem:[#allocation2 + $0x160] sm:$0xff]
    %v787 = vld [vmem:[#allocation2 + $0x168] sm:$0xff]
    %v788 = vld [vmem:[#allocation2 + $0x170] sm:$0xff]
    %v789 = vld [vmem:[#allocation2 + $0x178] sm:$0xff]
    %v790 = vld [vmem:[#allocation2 + $0x180] sm:$0xff]
    %v791 = vld [vmem:[#allocation2 + $0x188] sm:$0xff]
    %v792 = vld [vmem:[#allocation2 + $0x190] sm:$0xff]
    %v793 = vld [vmem:[#allocation2 + $0x198] sm:$0xff]
    %v794 = vld [vmem:[#allocation2 + $0x1a0] sm:$0xff]
    %v795 = vld [vmem:[#allocation2 + $0x1a8] sm:$0xff]
    %v796 = vld [vmem:[#allocation2 + $0x1b0] sm:$0xff]
    %v797 = vld [vmem:[#allocation2 + $0x1b8] sm:$0xff]
    %v798 = vld [vmem:[#allocation2 + $0x1c0] sm:$0xff]
    %v799 = vld [vmem:[#allocation2 + $0x1c8] sm:$0xff]
    %v800 = vld [vmem:[#allocation2 + $0x1d0] sm:$0xff]
    %v801 = vld [vmem:[#allocation2 + $0x1d8] sm:$0xff]
    %v802 = vld [vmem:[#allocation2 + $0x1e0] sm:$0xff]
    %v803 = vld [vmem:[#allocation2 + $0x1e8] sm:$0xff]
    %v804 = vld [vmem:[#allocation2 + $0x1f0] sm:$0xff]
    %v805 = vld [vmem:[#allocation2 + $0x1f8] sm:$0xff]
    %v806 = vld [vmem:[%s2] sm:$0x1]
    %v808 = vlaneseq
    %v809 = vshrl.u32 %v808, 7
    %v810 = vsub.s32 0, %v809
    %v811 = vrot.slane %v806, %v810
    %v813 = vadd.f32 %v742, %v811
    %v814 = vadd.f32 %v743, %v811
    %v815 = vadd.f32 %v744, %v811
    %v816 = vadd.f32 %v745, %v811
    %v817 = vadd.f32 %v746, %v811
    %v818 = vadd.f32 %v747, %v811
    %v819 = vadd.f32 %v748, %v811
    %v820 = vadd.f32 %v749, %v811
    %v821 = vadd.f32 %v750, %v811
    %v822 = vadd.f32 %v751, %v811
    %v823 = vadd.f32 %v752, %v811
    %v824 = vadd.f32 %v753, %v811
    %v825 = vadd.f32 %v754, %v811
    %v826 = vadd.f32 %v755, %v811
    %v827 = vadd.f32 %v756, %v811
    %v828 = vadd.f32 %v757, %v811
    %v829 = vadd.f32 %v758, %v811
    %v830 = vadd.f32 %v759, %v811
    %v831 = vadd.f32 %v760, %v811
    %v832 = vadd.f32 %v761, %v811
    %v833 = vadd.f32 %v762, %v811
    %v834 = vadd.f32 %v763, %v811
    %v835 = vadd.f32 %v764, %v811
    %v836 = vadd.f32 %v765, %v811
    %v837 = vadd.f32 %v766, %v811
    %v838 = vadd.f32 %v767, %v811
    %v839 = vadd.f32 %v768, %v811
    %v840 = vadd.f32 %v769, %v811
    %v841 = vadd.f32 %v770, %v811
    %v842 = vadd.f32 %v771, %v811
    %v843 = vadd.f32 %v772, %v811
    %v844 = vadd.f32 %v773, %v811
    %v845 = vadd.f32 %v774, %v811
    %v846 = vadd.f32 %v775, %v811
    %v847 = vadd.f32 %v776, %v811
    %v848 = vadd.f32 %v777, %v811
    %v849 = vadd.f32 %v778, %v811
    %v850 = vadd.f32 %v779, %v811
    %v851 = vadd.f32 %v780, %v811
    %v852 = vadd.f32 %v781, %v811
    %v853 = vadd.f32 %v782, %v811
    %v854 = vadd.f32 %v783, %v811
    %v855 = vadd.f32 %v784, %v811
    %v856 = vadd.f32 %v785, %v811
    %v857 = vadd.f32 %v786, %v811
    %v858 = vadd.f32 %v787, %v811
    %v859 = vadd.f32 %v788, %v811
    %v860 = vadd.f32 %v789, %v811
    %v861 = vadd.f32 %v790, %v811
    %v862 = vadd.f32 %v791, %v811
    %v863 = vadd.f32 %v792, %v811
    %v864 = vadd.f32 %v793, %v811
    %v865 = vadd.f32 %v794, %v811
    %v866 = vadd.f32 %v795, %v811
    %v867 = vadd.f32 %v796, %v811
    %v868 = vadd.f32 %v797, %v811
    %v869 = vadd.f32 %v798, %v811
    %v870 = vadd.f32 %v799, %v811
    %v871 = vadd.f32 %v800, %v811
    %v872 = vadd.f32 %v801, %v811
    %v873 = vadd.f32 %v802, %v811
    %v874 = vadd.f32 %v803, %v811
    %v875 = vadd.f32 %v804, %v811
    %v876 = vadd.f32 %v805, %v811
    %877 = vst [vmem:[%s3] sm:$0xff] %v813
    %878 = vst [vmem:[%s3 + $0x8] sm:$0xff] %v814
    %879 = vst [vmem:[%s3 + $0x10] sm:$0xff] %v815
    %880 = vst [vmem:[%s3 + $0x18] sm:$0xff] %v816
    %881 = vst [vmem:[%s3 + $0x20] sm:$0xff] %v817
    %882 = vst [vmem:[%s3 + $0x28] sm:$0xff] %v818
    %883 = vst [vmem:[%s3 + $0x30] sm:$0xff] %v819
    %884 = vst [vmem:[%s3 + $0x38] sm:$0xff] %v820
    %885 = vst [vmem:[%s3 + $0x40] sm:$0xff] %v821
    %886 = vst [vmem:[%s3 + $0x48] sm:$0xff] %v822
    %887 = vst [vmem:[%s3 + $0x50] sm:$0xff] %v823
    %888 = vst [vmem:[%s3 + $0x58] sm:$0xff] %v824
    %889 = vst [vmem:[%s3 + $0x60] sm:$0xff] %v825
    %890 = vst [vmem:[%s3 + $0x68] sm:$0xff] %v826
    %891 = vst [vmem:[%s3 + $0x70] sm:$0xff] %v827
    %892 = vst [vmem:[%s3 + $0x78] sm:$0xff] %v828
    %893 = vst [vmem:[%s3 + $0x80] sm:$0xff] %v829
    %894 = vst [vmem:[%s3 + $0x88] sm:$0xff] %v830
    %895 = vst [vmem:[%s3 + $0x90] sm:$0xff] %v831
    %896 = vst [vmem:[%s3 + $0x98] sm:$0xff] %v832
    %897 = vst [vmem:[%s3 + $0xa0] sm:$0xff] %v833
    %898 = vst [vmem:[%s3 + $0xa8] sm:$0xff] %v834
    %899 = vst [vmem:[%s3 + $0xb0] sm:$0xff] %v835
    %900 = vst [vmem:[%s3 + $0xb8] sm:$0xff] %v836
    %901 = vst [vmem:[%s3 + $0xc0] sm:$0xff] %v837
    %902 = vst [vmem:[%s3 + $0xc8] sm:$0xff] %v838
    %903 = vst [vmem:[%s3 + $0xd0] sm:$0xff] %v839
    %904 = vst [vmem:[%s3 + $0xd8] sm:$0xff] %v840
    %905 = vst [vmem:[%s3 + $0xe0] sm:$0xff] %v841
    %906 = vst [vmem:[%s3 + $0xe8] sm:$0xff] %v842
    %907 = vst [vmem:[%s3 + $0xf0] sm:$0xff] %v843
    %908 = vst [vmem:[%s3 + $0xf8] sm:$0xff] %v844
    %909 = vst [vmem:[%s3 + $0x100] sm:$0xff] %v845
    %910 = vst [vmem:[%s3 + $0x108] sm:$0xff] %v846
    %911 = vst [vmem:[%s3 + $0x110] sm:$0xff] %v847
    %912 = vst [vmem:[%s3 + $0x118] sm:$0xff] %v848
    %913 = vst [vmem:[%s3 + $0x120] sm:$0xff] %v849
    %914 = vst [vmem:[%s3 + $0x128] sm:$0xff] %v850
    %915 = vst [vmem:[%s3 + $0x130] sm:$0xff] %v851
    %916 = vst [vmem:[%s3 + $0x138] sm:$0xff] %v852
    %917 = vst [vmem:[%s3 + $0x140] sm:$0xff] %v853
    %918 = vst [vmem:[%s3 + $0x148] sm:$0xff] %v854
    %919 = vst [vmem:[%s3 + $0x150] sm:$0xff] %v855
    %920 = vst [vmem:[%s3 + $0x158] sm:$0xff] %v856
    %921 = vst [vmem:[%s3 + $0x160] sm:$0xff] %v857
    %922 = vst [vmem:[%s3 + $0x168] sm:$0xff] %v858
    %923 = vst [vmem:[%s3 + $0x170] sm:$0xff] %v859
    %924 = vst [vmem:[%s3 + $0x178] sm:$0xff] %v860
    %925 = vst [vmem:[%s3 + $0x180] sm:$0xff] %v861
    %926 = vst [vmem:[%s3 + $0x188] sm:$0xff] %v862
    %927 = vst [vmem:[%s3 + $0x190] sm:$0xff] %v863
    %928 = vst [vmem:[%s3 + $0x198] sm:$0xff] %v864
    %929 = vst [vmem:[%s3 + $0x1a0] sm:$0xff] %v865
    %930 = vst [vmem:[%s3 + $0x1a8] sm:$0xff] %v866
    %931 = vst [vmem:[%s3 + $0x1b0] sm:$0xff] %v867
    %932 = vst [vmem:[%s3 + $0x1b8] sm:$0xff] %v868
    %933 = vst [vmem:[%s3 + $0x1c0] sm:$0xff] %v869
    %934 = vst [vmem:[%s3 + $0x1c8] sm:$0xff] %v870
    %935 = vst [vmem:[%s3 + $0x1d0] sm:$0xff] %v871
    %936 = vst [vmem:[%s3 + $0x1d8] sm:$0xff] %v872
    %937 = vst [vmem:[%s3 + $0x1e0] sm:$0xff] %v873
    %938 = vst [vmem:[%s3 + $0x1e8] sm:$0xff] %v874
    %939 = vst [vmem:[%s3 + $0x1f0] sm:$0xff] %v875
    %940 = vst [vmem:[%s3 + $0x1f8] sm:$0xff] %v876
  $region21: #{moves_forward.9} parent=0 // pred_fallthru
    _
  // Predicated region
  $region22: #{moves_forward.9} parent=0 // pred_check
    _
  $region23: #{moves_forward.9} parent=0 // pred_check_branch
    %942 = sbr.rel (0) target = $region25
  $region24: #{moves_forward.9} parent=0 // pred_region
    _
  $region25: #{moves_forward.9} parent=0 // pred_fallthru
    _
  // Predicated region
  $region26: #{moves_forward.9} parent=0 // pred_check
    _
  $region27: #{moves_forward.9} parent=0 // pred_check_branch
    %944 = sbr.rel (0) target = $region29
  $region28: #{moves_forward.9} parent=0 // pred_region
    _
  $region29: #{moves_forward.9} parent=0 // pred_fallthru
    _

</llo_original>
